<compile_context>
chip_gen: v5e
topology: v5e:2x2
jax: 0.10.0
libtpu: 0.0.40
codegen_flags: <defaults>
</compile_context>

<pallas_src>
import functools
import math

import jax
import jax.numpy as jnp
from jax.experimental import pallas as pl
from jax.experimental.pallas import tpu as pltpu

# ---------------- model constants ----------------
D_MODEL = 32
N_HEAD = 4
HEAD_DIM = D_MODEL // N_HEAD          # 8
DIM_FF = 64
EPS = 1e-5                            # layer_norm_eps
ATT_SCALE = 1.0 / math.sqrt(HEAD_DIM)

# ---------------- packed parameter slab layout (P_ROWS x 128 lanes, f32) ----------------
P_LANES = 128
R_WQKV_S = 0                          # (32, 96)  self-attn  Wq*scale | Wk | Wv
R_WP_S   = R_WQKV_S + D_MODEL         # (32, 32)  self-attn  out proj
R_WQ_C   = R_WP_S + D_MODEL           # (32, 32)  cross-attn Wq*scale
R_WKV_C  = R_WQ_C + D_MODEL           # (32, 64)  cross-attn Wk | Wv
R_WP_C   = R_WKV_C + D_MODEL          # (32, 32)  cross-attn out proj
R_W1     = R_WP_C + D_MODEL           # (32, 64)  FFN linear1
R_W2     = R_W1 + D_MODEL             # (64, 32)  FFN linear2
R_VEC    = R_W2 + DIM_FF              # 256: start of the one-row vectors
V_LN     = R_VEC + 0                  # (6, 32): g1,b1,g2,b2,g3,b3
V_BQKV_S = R_VEC + 6                  # (1, 96)
V_BP_S   = R_VEC + 7                  # (1, 32)
V_BQ_C   = R_VEC + 8                  # (1, 32)  (scaled)
V_BKV_C  = R_VEC + 9                  # (1, 64)
V_BP_C   = R_VEC + 10                 # (1, 32)
V_B1     = R_VEC + 11                 # (1, 64)
V_B2     = R_VEC + 12                 # (1, 32)
P_ROWS   = 272                        # padded to a multiple of 8


# ---------------- in-kernel helpers ----------------

def _layernorm(x, gamma, beta):
    mu = jnp.mean(x, axis=-1, keepdims=True)
    var = jnp.mean(jnp.square(x - mu), axis=-1, keepdims=True)
    return (x - mu) * jax.lax.rsqrt(var + EPS) * gamma + beta


def _split_heads(y2, bsz, length, col0):
    """(B*L, cols) flat activations -> (H*B, L, hd), batch order n = h*B + b.

    Heads are extracted as static lane slices (projection output is head-major)
    and stacked on a new leading axis; the trailing reshape only splits the
    sublane dim at a tile boundary (L is a multiple of 8) and merges leading
    dims, so no sublane<->lane relayout is involved.
    """
    parts = [y2[:, col0 + h * HEAD_DIM: col0 + (h + 1) * HEAD_DIM]
             for h in range(N_HEAD)]
    stacked = jnp.stack(parts, axis=0)                 # (H, B*L, hd)
    return stacked.reshape(N_HEAD * bsz, length, HEAD_DIM)


def _attention(q, k, v, wp, bp, bsz):
    """q: (H*B,T,hd), k/v: (H*B,L,hd), wp: (D,D), bp: (1,D).

    Returns (projected output (B*T,D), head-averaged attention (B*T,L)).
    The 1/sqrt(hd) scale is already folded into Wq/bq at pack time.
    """
    hb, t, hd = q.shape
    l_len = k.shape[1]
    d = wp.shape[1]

    s = jnp.einsum('nte,nse->nts', q, k, preferred_element_type=jnp.float32)
    m = jnp.max(s, axis=-1, keepdims=True)
    e = jnp.exp(s - m)
    p = e / jnp.sum(e, axis=-1, keepdims=True)         # exact softmax (rows sum to 1)

    y = jnp.einsum('nts,nse->nte', p, v, preferred_element_type=jnp.float32)   # (H*B,T,hd)

    # Output projection == concat-heads @ Wp, expressed without a sublane->lane
    # relayout: head-batched matmul against the head-split Wp + leading-axis sum.
    y_h = y.reshape(N_HEAD, bsz * t, hd)               # tile-preserving reshape
    wp_h = wp.reshape(N_HEAD, hd, d)                   # (H, hd, D)
    o = jnp.einsum('hne,hed->hnd', y_h, wp_h, preferred_element_type=jnp.float32)
    o = jnp.sum(o, axis=0) + bp                        # (B*T, D)

    att = p.reshape(N_HEAD, bsz * t, l_len)
    att_mean = jnp.sum(att, axis=0) * (1.0 / N_HEAD)   # (B*T, L)
    return o, att_mean


# ---------------- the Pallas kernel (single invocation, no grid) ----------------

def decoder_kernel(bsz, t_len, s_len, tgt_ref, mem_ref, p_ref, x_out_ref, att_out_ref):
    d, ff = D_MODEL, DIM_FF
    x = tgt_ref[...]                 # (B*T, D)
    mem = mem_ref[...]               # (B*S, D)

    # ---- static views into the packed parameter slab ----
    wqkv_s = p_ref[R_WQKV_S:R_WQKV_S + d, 0:3 * d]
    wp_s   = p_ref[R_WP_S:R_WP_S + d, 0:d]
    wq_c   = p_ref[R_WQ_C:R_WQ_C + d, 0:d]
    wkv_c  = p_ref[R_WKV_C:R_WKV_C + d, 0:2 * d]
    wp_c   = p_ref[R_WP_C:R_WP_C + d, 0:d]
    w1     = p_ref[R_W1:R_W1 + d, 0:ff]
    w2     = p_ref[R_W2:R_W2 + ff, 0:d]
    ln     = p_ref[V_LN:V_LN + 6, 0:d]
    bqkv_s = p_ref[V_BQKV_S:V_BQKV_S + 1, 0:3 * d]
    bp_s   = p_ref[V_BP_S:V_BP_S + 1, 0:d]
    bq_c   = p_ref[V_BQ_C:V_BQ_C + 1, 0:d]
    bkv_c  = p_ref[V_BKV_C:V_BKV_C + 1, 0:2 * d]
    bp_c   = p_ref[V_BP_C:V_BP_C + 1, 0:d]
    b1     = p_ref[V_B1:V_B1 + 1, 0:ff]
    b2     = p_ref[V_B2:V_B2 + 1, 0:d]

    # ---- self attention (one fused (D,3D) projection) + add & norm1 ----
    qkv = jnp.dot(x, wqkv_s, preferred_element_type=jnp.float32) + bqkv_s   # (B*T, 3D)
    q = _split_heads(qkv, bsz, t_len, 0)
    k = _split_heads(qkv, bsz, t_len, d)
    v = _split_heads(qkv, bsz, t_len, 2 * d)
    sa, _ = _attention(q, k, v, wp_s, bp_s, bsz)
    x = _layernorm(x + sa, ln[0:1], ln[1:2])

    # ---- cross attention (fused (D,2D) K|V projection) + add & norm2 ----
    qc = jnp.dot(x, wq_c, preferred_element_type=jnp.float32) + bq_c        # (B*T, D)
    kvc = jnp.dot(mem, wkv_c, preferred_element_type=jnp.float32) + bkv_c   # (B*S, 2D)
    qh = _split_heads(qc, bsz, t_len, 0)
    kh = _split_heads(kvc, bsz, s_len, 0)
    vh = _split_heads(kvc, bsz, s_len, d)
    ca, attention = _attention(qh, kh, vh, wp_c, bp_c, bsz)
    x = _layernorm(x + ca, ln[2:3], ln[3:4])

    # ---- feed-forward (linear1 -> relu -> linear2) + add & norm3 ----
    h1 = jnp.maximum(jnp.dot(x, w1, preferred_element_type=jnp.float32) + b1, 0.0)
    ffo = jnp.dot(h1, w2, preferred_element_type=jnp.float32) + b2
    x = _layernorm(x + ffo, ln[4:5], ln[5:6])

    x_out_ref[...] = x               # (B*T, D)
    att_out_ref[...] = attention     # (B*T, S)


# ---------------- parameter packing (wrapper-side) ----------------

def pack_params(params):
    (wq_s, bq_s, wk_s, bk_s, wv_s, bv_s, wp_s, bp_s,
     wq_c, bq_c, wk_c, bk_c, wv_c, bv_c, wp_c, bp_c,
     w1, b1, w2, b2, g1, be1, g2, be2, g3, be3) = params

    buf = jnp.zeros((P_ROWS, P_LANES), jnp.float32)

    def put(b, row, mat):
        r, c = mat.shape
        return b.at[row:row + r, 0:c].set(mat.astype(jnp.float32))

    buf = put(buf, R_WQKV_S, jnp.concatenate([wq_s * ATT_SCALE, wk_s, wv_s], axis=1))
    buf = put(buf, R_WP_S, wp_s)
    buf = put(buf, R_WQ_C, wq_c * ATT_SCALE)
    buf = put(buf, R_WKV_C, jnp.concatenate([wk_c, wv_c], axis=1))
    buf = put(buf, R_WP_C, wp_c)
    buf = put(buf, R_W1, w1)
    buf = put(buf, R_W2, w2)
    buf = put(buf, V_LN, jnp.concatenate([g1, be1, g2, be2, g3, be3], axis=0))
    buf = put(buf, V_BQKV_S, jnp.concatenate([bq_s * ATT_SCALE, bk_s, bv_s], axis=1))
    buf = put(buf, V_BP_S, bp_s)
    buf = put(buf, V_BQ_C, bq_c * ATT_SCALE)
    buf = put(buf, V_BKV_C, jnp.concatenate([bk_c, bv_c], axis=1))
    buf = put(buf, V_BP_C, bp_c)
    buf = put(buf, V_B1, b1)
    buf = put(buf, V_B2, b2)
    return buf


def transformer_decoder_layer(tgt, memory, params):
    bsz, t_len, d = tgt.shape
    s_len = memory.shape[1]
    assert d == D_MODEL
    packed = pack_params(params)                     # ONE param slab -> one DMA

    vmem = pl.BlockSpec(memory_space=pltpu.MemorySpace.VMEM)
    kernel = functools.partial(decoder_kernel, bsz, t_len, s_len)
    x_flat, att_flat = pl.pallas_call(
        kernel,
        in_specs=[vmem, vmem, vmem],
        out_specs=(vmem, vmem),
        out_shape=(jax.ShapeDtypeStruct((bsz * t_len, d), jnp.float32),
                   jax.ShapeDtypeStruct((bsz * t_len, s_len), jnp.float32)),
    )(tgt.reshape(bsz * t_len, d), memory.reshape(bsz * s_len, d), packed)
    return x_flat.reshape(bsz, t_len, d), att_flat.reshape(bsz, t_len, s_len)


# ---------------- pure-JAX reference (mirrors the PyTorch forward) ----------------

_HI = jax.lax.Precision.HIGHEST


def _mha_ref(q_in, k_in, v_in, wq, bq, wk, bk, wv, bv, wp, bp, n_head):
    B, T, D = q_in.shape
    S = k_in.shape[1]
    hd = D // n_head

    def lin(x, w, b):
        return jnp.dot(x, w, precision=_HI) + b

    def split(x, L):
        return x.reshape(B, L, n_head, hd).transpose(0, 2, 1, 3)

    q = split(lin(q_in, wq, bq), T)
    k = split(lin(k_in, wk, bk), S)
    v = split(lin(v_in, wv, bv), S)
    att = jax.nn.softmax(
        jnp.einsum('bhtd,bhsd->bhts', q, k, precision=_HI) * (1.0 / math.sqrt(hd)),
        axis=-1)
    y = jnp.einsum('bhts,bhsd->bhtd', att, v, precision=_HI)
    y = y.transpose(0, 2, 1, 3).reshape(B, T, D)
    y = lin(y, wp, bp)
    return y, att.mean(axis=1)


def _ln_ref(x, g, b):
    mu = x.mean(-1, keepdims=True)
    var = ((x - mu) ** 2).mean(-1, keepdims=True)
    return (x - mu) * jax.lax.rsqrt(var + EPS) * g + b


def reference(tgt, memory, params):
    (wq_s, bq_s, wk_s, bk_s, wv_s, bv_s, wp_s, bp_s,
     wq_c, bq_c, wk_c, bk_c, wv_c, bv_c, wp_c, bp_c,
     w1, b1, w2, b2, g1, be1, g2, be2, g3, be3) = params
    x = tgt
    sa, _ = _mha_ref(x, x, x, wq_s, bq_s, wk_s, bk_s, wv_s, bv_s, wp_s, bp_s, N_HEAD)
    x = _ln_ref(x + sa, g1, be1)
    ca, attention = _mha_ref(x, memory, memory, wq_c, bq_c, wk_c, bk_c,
                             wv_c, bv_c, wp_c, bp_c, N_HEAD)
    x = _ln_ref(x + ca, g2, be2)
    ff = jnp.dot(jax.nn.relu(jnp.dot(x, w1, precision=_HI) + b1), w2, precision=_HI) + b2
    x = _ln_ref(x + ff, g3, be3)
    return x, attention


# ---------------- deterministic parameter construction ----------------

def make_params(key):
    keys = iter(jax.random.split(key, 32))

    def lin(d_in, d_out):
        w = 0.05 * jax.random.normal(next(keys), (d_in, d_out), jnp.float32)
        b = 0.05 * jax.random.normal(next(keys), (1, d_out), jnp.float32)
        return [w, b]

    p = []
    for _ in range(4):              # self-attn: query, key, value, proj
        p += lin(D_MODEL, D_MODEL)
    for _ in range(4):              # cross-attn: query, key, value, proj
        p += lin(D_MODEL, D_MODEL)
    p += lin(D_MODEL, DIM_FF)       # linear1
    p += lin(DIM_FF, D_MODEL)       # linear2
    for _ in range(3):              # norm1..3 (gamma, beta)
        g = 1.0 + 0.1 * jax.random.normal(next(keys), (1, D_MODEL), jnp.float32)
        be = 0.1 * jax.random.normal(next(keys), (1, D_MODEL), jnp.float32)
        p += [g, be]
    return p


if __name__ == "__main__":
    key = jax.random.PRNGKey(0)
    k_tgt, k_mem, k_par = jax.random.split(key, 3)

    B, T, S = 2, 8, 16
    tgt = jax.random.normal(k_tgt, (B, T, D_MODEL), jnp.float32)
    memory = jax.random.normal(k_mem, (B, S, D_MODEL), jnp.float32)
    params = make_params(k_par)

    run = jax.jit(transformer_decoder_layer)
    x_out, att_out = run(tgt, memory, params)
    jax.block_until_ready((x_out, att_out))

    x_ref, att_ref = reference(tgt, memory, params)
    assert x_out.shape == (B, T, D_MODEL) and att_out.shape == (B, T, S)
    # Exact softmax normalization (no approx reciprocal) -> tolerance tightened
    # from 2e-3 to 1e-3; remaining delta is EUP exp/rsqrt rounding.
    TOL = 1e-3
    assert jnp.allclose(x_out, x_ref, atol=TOL, rtol=TOL), \
        float(jnp.max(jnp.abs(x_out - x_ref)))
    assert jnp.allclose(att_out, att_ref, atol=TOL, rtol=TOL), \
        float(jnp.max(jnp.abs(att_out - att_ref)))

    print("KERNEL_OK")
</pallas_src>

<mosaic_0001>
module attributes {stable_mosaic.version = 11 : i64} {
  func.func @decoder_kernel(%arg0: memref<16x32xf32, #tpu.memory_space<vmem>>, %arg1: memref<32x32xf32, #tpu.memory_space<vmem>>, %arg2: memref<272x128xf32, #tpu.memory_space<vmem>>, %arg3: memref<16x32xf32, #tpu.memory_space<vmem>>, %arg4: memref<16x16xf32, #tpu.memory_space<vmem>>) attributes {dimension_semantics = [], scalar_prefetch = 0 : i64, scratch_operands = 0 : i64, tpu.core_type = #tpu.core_type<tc>} {
    %c0 = arith.constant 0 : index
    %c0_0 = arith.constant 0 : index
    %0 = vector.load %arg0[%c0, %c0_0] : memref<16x32xf32, #tpu.memory_space<vmem>>, vector<16x32xf32>
    %c0_1 = arith.constant 0 : index
    %c0_2 = arith.constant 0 : index
    %1 = vector.load %arg1[%c0_1, %c0_2] : memref<32x32xf32, #tpu.memory_space<vmem>>, vector<32x32xf32>
    %c0_3 = arith.constant 0 : index
    %c0_4 = arith.constant 0 : index
    %2 = vector.load %arg2[%c0_3, %c0_4] : memref<272x128xf32, #tpu.memory_space<vmem>>, vector<32x96xf32>
    %c32 = arith.constant 32 : index
    %c0_5 = arith.constant 0 : index
    %3 = vector.load %arg2[%c32, %c0_5] : memref<272x128xf32, #tpu.memory_space<vmem>>, vector<32x32xf32>
    %c64 = arith.constant 64 : index
    %c0_6 = arith.constant 0 : index
    %4 = vector.load %arg2[%c64, %c0_6] : memref<272x128xf32, #tpu.memory_space<vmem>>, vector<32x32xf32>
    %c96 = arith.constant 96 : index
    %c0_7 = arith.constant 0 : index
    %5 = vector.load %arg2[%c96, %c0_7] : memref<272x128xf32, #tpu.memory_space<vmem>>, vector<32x64xf32>
    %c128 = arith.constant 128 : index
    %c0_8 = arith.constant 0 : index
    %6 = vector.load %arg2[%c128, %c0_8] : memref<272x128xf32, #tpu.memory_space<vmem>>, vector<32x32xf32>
    %c160 = arith.constant 160 : index
    %c0_9 = arith.constant 0 : index
    %7 = vector.load %arg2[%c160, %c0_9] : memref<272x128xf32, #tpu.memory_space<vmem>>, vector<32x64xf32>
    %c192 = arith.constant 192 : index
    %c0_10 = arith.constant 0 : index
    %8 = vector.load %arg2[%c192, %c0_10] : memref<272x128xf32, #tpu.memory_space<vmem>>, vector<64x32xf32>
    %c256 = arith.constant 256 : index
    %c0_11 = arith.constant 0 : index
    %9 = vector.load %arg2[%c256, %c0_11] : memref<272x128xf32, #tpu.memory_space<vmem>>, vector<6x32xf32>
    %c262 = arith.constant 262 : index
    %c0_12 = arith.constant 0 : index
    %10 = vector.load %arg2[%c262, %c0_12] : memref<272x128xf32, #tpu.memory_space<vmem>>, vector<1x96xf32>
    %c263 = arith.constant 263 : index
    %c0_13 = arith.constant 0 : index
    %11 = vector.load %arg2[%c263, %c0_13] : memref<272x128xf32, #tpu.memory_space<vmem>>, vector<1x32xf32>
    %c264 = arith.constant 264 : index
    %c0_14 = arith.constant 0 : index
    %12 = vector.load %arg2[%c264, %c0_14] : memref<272x128xf32, #tpu.memory_space<vmem>>, vector<1x32xf32>
    %c265 = arith.constant 265 : index
    %c0_15 = arith.constant 0 : index
    %13 = vector.load %arg2[%c265, %c0_15] : memref<272x128xf32, #tpu.memory_space<vmem>>, vector<1x64xf32>
    %c266 = arith.constant 266 : index
    %c0_16 = arith.constant 0 : index
    %14 = vector.load %arg2[%c266, %c0_16] : memref<272x128xf32, #tpu.memory_space<vmem>>, vector<1x32xf32>
    %c267 = arith.constant 267 : index
    %c0_17 = arith.constant 0 : index
    %15 = vector.load %arg2[%c267, %c0_17] : memref<272x128xf32, #tpu.memory_space<vmem>>, vector<1x64xf32>
    %c268 = arith.constant 268 : index
    %c0_18 = arith.constant 0 : index
    %16 = vector.load %arg2[%c268, %c0_18] : memref<272x128xf32, #tpu.memory_space<vmem>>, vector<1x32xf32>
    %cst = arith.constant dense<0.000000e+00> : vector<16x96xf32>
    %17 = tpu.matmul %0, %2, %cst {dimension_numbers = #tpu.dot_dimension_numbers<[1], [0], [0], [1], [0, 0, 1, 1], [], []>} : vector<16x32xf32>, vector<32x96xf32>, vector<16x96xf32> -> vector<16x96xf32>
    %18 = vector.broadcast %10 : vector<1x96xf32> to vector<16x96xf32>
    %19 = arith.addf %17, %18 : vector<16x96xf32>
    %20 = vector.extract_strided_slice %19 {offsets = [0, 0], sizes = [16, 8], strides = [1, 1]} : vector<16x96xf32> to vector<16x8xf32>
    %21 = vector.extract_strided_slice %19 {offsets = [0, 8], sizes = [16, 8], strides = [1, 1]} : vector<16x96xf32> to vector<16x8xf32>
    %22 = vector.extract_strided_slice %19 {offsets = [0, 16], sizes = [16, 8], strides = [1, 1]} : vector<16x96xf32> to vector<16x8xf32>
    %23 = vector.extract_strided_slice %19 {offsets = [0, 24], sizes = [16, 8], strides = [1, 1]} : vector<16x96xf32> to vector<16x8xf32>
    %24 = vector.shape_cast %20 : vector<16x8xf32> to vector<1x16x8xf32>
    %25 = vector.shape_cast %21 : vector<16x8xf32> to vector<1x16x8xf32>
    %26 = vector.shape_cast %22 : vector<16x8xf32> to vector<1x16x8xf32>
    %27 = vector.shape_cast %23 : vector<16x8xf32> to vector<1x16x8xf32>
    %28 = tpu.concatenate %24, %25, %26, %27 in 0 : vector<1x16x8xf32>, vector<1x16x8xf32>, vector<1x16x8xf32>, vector<1x16x8xf32> -> vector<4x16x8xf32>
    %29 = vector.shape_cast %28 : vector<4x16x8xf32> to vector<8x8x8xf32>
    %30 = vector.extract_strided_slice %19 {offsets = [0, 32], sizes = [16, 8], strides = [1, 1]} : vector<16x96xf32> to vector<16x8xf32>
    %31 = vector.extract_strided_slice %19 {offsets = [0, 40], sizes = [16, 8], strides = [1, 1]} : vector<16x96xf32> to vector<16x8xf32>
    %32 = vector.extract_strided_slice %19 {offsets = [0, 48], sizes = [16, 8], strides = [1, 1]} : vector<16x96xf32> to vector<16x8xf32>
    %33 = vector.extract_strided_slice %19 {offsets = [0, 56], sizes = [16, 8], strides = [1, 1]} : vector<16x96xf32> to vector<16x8xf32>
    %34 = vector.shape_cast %30 : vector<16x8xf32> to vector<1x16x8xf32>
    %35 = vector.shape_cast %31 : vector<16x8xf32> to vector<1x16x8xf32>
    %36 = vector.shape_cast %32 : vector<16x8xf32> to vector<1x16x8xf32>
    %37 = vector.shape_cast %33 : vector<16x8xf32> to vector<1x16x8xf32>
    %38 = tpu.concatenate %34, %35, %36, %37 in 0 : vector<1x16x8xf32>, vector<1x16x8xf32>, vector<1x16x8xf32>, vector<1x16x8xf32> -> vector<4x16x8xf32>
    %39 = vector.shape_cast %38 : vector<4x16x8xf32> to vector<8x8x8xf32>
    %40 = vector.extract_strided_slice %19 {offsets = [0, 64], sizes = [16, 8], strides = [1, 1]} : vector<16x96xf32> to vector<16x8xf32>
    %41 = vector.extract_strided_slice %19 {offsets = [0, 72], sizes = [16, 8], strides = [1, 1]} : vector<16x96xf32> to vector<16x8xf32>
    %42 = vector.extract_strided_slice %19 {offsets = [0, 80], sizes = [16, 8], strides = [1, 1]} : vector<16x96xf32> to vector<16x8xf32>
    %43 = vector.extract_strided_slice %19 {offsets = [0, 88], sizes = [16, 8], strides = [1, 1]} : vector<16x96xf32> to vector<16x8xf32>
    %44 = vector.shape_cast %40 : vector<16x8xf32> to vector<1x16x8xf32>
    %45 = vector.shape_cast %41 : vector<16x8xf32> to vector<1x16x8xf32>
    %46 = vector.shape_cast %42 : vector<16x8xf32> to vector<1x16x8xf32>
    %47 = vector.shape_cast %43 : vector<16x8xf32> to vector<1x16x8xf32>
    %48 = tpu.concatenate %44, %45, %46, %47 in 0 : vector<1x16x8xf32>, vector<1x16x8xf32>, vector<1x16x8xf32>, vector<1x16x8xf32> -> vector<4x16x8xf32>
    %49 = vector.shape_cast %48 : vector<4x16x8xf32> to vector<8x8x8xf32>
    "tpu.trace_start"() <{level = 10 : i32, message = "nte,nse->nts"}> : () -> ()
    %cst_19 = arith.constant dense<0.000000e+00> : vector<8x8x8xf32>
    %50 = tpu.matmul %29, %39, %cst_19 {dimension_numbers = #tpu.dot_dimension_numbers<[2], [2], [1], [1], [0, 0, 0, 1, 1, 1], [0], [0]>} : vector<8x8x8xf32>, vector<8x8x8xf32>, vector<8x8x8xf32> -> vector<8x8x8xf32>
    "tpu.trace_stop"() : () -> ()
    %cst_20 = arith.constant dense<0xFF800000> : vector<8x8xf32>
    %51 = vector.multi_reduction <maximumf>, %50, %cst_20 [2] : vector<8x8x8xf32> to vector<8x8xf32>
    %52 = vector.shape_cast %51 : vector<8x8xf32> to vector<8x8x1xf32>
    %53 = vector.broadcast %52 : vector<8x8x1xf32> to vector<8x8x8xf32>
    %54 = arith.subf %50, %53 : vector<8x8x8xf32>
    %55 = math.exp %54 : vector<8x8x8xf32>
    %cst_21 = arith.constant dense<0.000000e+00> : vector<8x8xf32>
    %56 = vector.multi_reduction <add>, %55, %cst_21 [2] : vector<8x8x8xf32> to vector<8x8xf32>
    %57 = vector.shape_cast %56 : vector<8x8xf32> to vector<8x8x1xf32>
    %58 = vector.broadcast %57 : vector<8x8x1xf32> to vector<8x8x8xf32>
    %59 = arith.divf %55, %58 : vector<8x8x8xf32>
    "tpu.trace_start"() <{level = 10 : i32, message = "nts,nse->nte"}> : () -> ()
    %cst_22 = arith.constant dense<0.000000e+00> : vector<8x8x8xf32>
    %60 = tpu.matmul %59, %49, %cst_22 {dimension_numbers = #tpu.dot_dimension_numbers<[2], [1], [1], [2], [0, 0, 0, 1, 1, 2], [0], [0]>} : vector<8x8x8xf32>, vector<8x8x8xf32>, vector<8x8x8xf32> -> vector<8x8x8xf32>
    "tpu.trace_stop"() : () -> ()
    %61 = vector.shape_cast %60 : vector<8x8x8xf32> to vector<4x16x8xf32>
    %62 = vector.shape_cast %3 : vector<32x32xf32> to vector<4x8x32xf32>
    "tpu.trace_start"() <{level = 10 : i32, message = "hne,hed->hnd"}> : () -> ()
    %cst_23 = arith.constant dense<0.000000e+00> : vector<4x16x32xf32>
    %63 = tpu.matmul %61, %62, %cst_23 {dimension_numbers = #tpu.dot_dimension_numbers<[2], [1], [1], [2], [0, 0, 0, 1, 1, 2], [0], [0]>} : vector<4x16x8xf32>, vector<4x8x32xf32>, vector<4x16x32xf32> -> vector<4x16x32xf32>
    "tpu.trace_stop"() : () -> ()
    %cst_24 = arith.constant dense<0.000000e+00> : vector<16x32xf32>
    %64 = vector.multi_reduction <add>, %63, %cst_24 [0] : vector<4x16x32xf32> to vector<16x32xf32>
    %65 = vector.broadcast %11 : vector<1x32xf32> to vector<16x32xf32>
    %66 = arith.addf %64, %65 : vector<16x32xf32>
    %67 = arith.addf %0, %66 : vector<16x32xf32>
    %68 = vector.extract_strided_slice %9 {offsets = [0, 0], sizes = [1, 32], strides = [1, 1]} : vector<6x32xf32> to vector<1x32xf32>
    %69 = vector.extract_strided_slice %9 {offsets = [1, 0], sizes = [1, 32], strides = [1, 1]} : vector<6x32xf32> to vector<1x32xf32>
    %cst_25 = arith.constant dense<0.000000e+00> : vector<16xf32>
    %70 = vector.multi_reduction <add>, %67, %cst_25 [1] : vector<16x32xf32> to vector<16xf32>
    %71 = vector.shape_cast %70 : vector<16xf32> to vector<16x1xf32>
    %cst_26 = arith.constant 3.200000e+01 : f32
    %72 = vector.broadcast %cst_26 : f32 to vector<16x1xf32>
    %73 = arith.divf %71, %72 : vector<16x1xf32>
    %74 = vector.broadcast %73 : vector<16x1xf32> to vector<16x32xf32>
    %75 = arith.subf %67, %74 : vector<16x32xf32>
    %76 = arith.mulf %75, %75 : vector<16x32xf32>
    %cst_27 = arith.constant dense<0.000000e+00> : vector<16xf32>
    %77 = vector.multi_reduction <add>, %76, %cst_27 [1] : vector<16x32xf32> to vector<16xf32>
    %78 = vector.shape_cast %77 : vector<16xf32> to vector<16x1xf32>
    %cst_28 = arith.constant 3.200000e+01 : f32
    %79 = vector.broadcast %cst_28 : f32 to vector<16x1xf32>
    %80 = arith.divf %78, %79 : vector<16x1xf32>
    %81 = vector.broadcast %73 : vector<16x1xf32> to vector<16x32xf32>
    %82 = arith.subf %67, %81 : vector<16x32xf32>
    %cst_29 = arith.constant 9.99999974E-6 : f32
    %83 = vector.broadcast %cst_29 : f32 to vector<16x1xf32>
    %84 = arith.addf %80, %83 : vector<16x1xf32>
    %85 = math.rsqrt %84 : vector<16x1xf32>
    %86 = vector.broadcast %85 : vector<16x1xf32> to vector<16x32xf32>
    %87 = arith.mulf %82, %86 : vector<16x32xf32>
    %88 = vector.broadcast %68 : vector<1x32xf32> to vector<16x32xf32>
    %89 = arith.mulf %87, %88 : vector<16x32xf32>
    %90 = vector.broadcast %69 : vector<1x32xf32> to vector<16x32xf32>
    %91 = arith.addf %89, %90 : vector<16x32xf32>
    %cst_30 = arith.constant dense<0.000000e+00> : vector<16x32xf32>
    %92 = tpu.matmul %91, %4, %cst_30 {dimension_numbers = #tpu.dot_dimension_numbers<[1], [0], [0], [1], [0, 0, 1, 1], [], []>} : vector<16x32xf32>, vector<32x32xf32>, vector<16x32xf32> -> vector<16x32xf32>
    %93 = vector.broadcast %12 : vector<1x32xf32> to vector<16x32xf32>
    %94 = arith.addf %92, %93 : vector<16x32xf32>
    %cst_31 = arith.constant dense<0.000000e+00> : vector<32x64xf32>
    %95 = tpu.matmul %1, %5, %cst_31 {dimension_numbers = #tpu.dot_dimension_numbers<[1], [0], [0], [1], [0, 0, 1, 1], [], []>} : vector<32x32xf32>, vector<32x64xf32>, vector<32x64xf32> -> vector<32x64xf32>
    %96 = vector.broadcast %13 : vector<1x64xf32> to vector<32x64xf32>
    %97 = arith.addf %95, %96 : vector<32x64xf32>
    %98 = vector.extract_strided_slice %94 {offsets = [0, 0], sizes = [16, 8], strides = [1, 1]} : vector<16x32xf32> to vector<16x8xf32>
    %99 = vector.extract_strided_slice %94 {offsets = [0, 8], sizes = [16, 8], strides = [1, 1]} : vector<16x32xf32> to vector<16x8xf32>
    %100 = vector.extract_strided_slice %94 {offsets = [0, 16], sizes = [16, 8], strides = [1, 1]} : vector<16x32xf32> to vector<16x8xf32>
    %101 = vector.extract_strided_slice %94 {offsets = [0, 24], sizes = [16, 8], strides = [1, 1]} : vector<16x32xf32> to vector<16x8xf32>
    %102 = vector.shape_cast %98 : vector<16x8xf32> to vector<1x16x8xf32>
    %103 = vector.shape_cast %99 : vector<16x8xf32> to vector<1x16x8xf32>
    %104 = vector.shape_cast %100 : vector<16x8xf32> to vector<1x16x8xf32>
    %105 = vector.shape_cast %101 : vector<16x8xf32> to vector<1x16x8xf32>
    %106 = tpu.concatenate %102, %103, %104, %105 in 0 : vector<1x16x8xf32>, vector<1x16x8xf32>, vector<1x16x8xf32>, vector<1x16x8xf32> -> vector<4x16x8xf32>
    %107 = vector.shape_cast %106 : vector<4x16x8xf32> to vector<8x8x8xf32>
    %108 = vector.extract_strided_slice %97 {offsets = [0, 0], sizes = [32, 8], strides = [1, 1]} : vector<32x64xf32> to vector<32x8xf32>
    %109 = vector.extract_strided_slice %97 {offsets = [0, 8], sizes = [32, 8], strides = [1, 1]} : vector<32x64xf32> to vector<32x8xf32>
    %110 = vector.extract_strided_slice %97 {offsets = [0, 16], sizes = [32, 8], strides = [1, 1]} : vector<32x64xf32> to vector<32x8xf32>
    %111 = vector.extract_strided_slice %97 {offsets = [0, 24], sizes = [32, 8], strides = [1, 1]} : vector<32x64xf32> to vector<32x8xf32>
    %112 = vector.shape_cast %108 : vector<32x8xf32> to vector<1x32x8xf32>
    %113 = vector.shape_cast %109 : vector<32x8xf32> to vector<1x32x8xf32>
    %114 = vector.shape_cast %110 : vector<32x8xf32> to vector<1x32x8xf32>
    %115 = vector.shape_cast %111 : vector<32x8xf32> to vector<1x32x8xf32>
    %116 = tpu.concatenate %112, %113, %114, %115 in 0 : vector<1x32x8xf32>, vector<1x32x8xf32>, vector<1x32x8xf32>, vector<1x32x8xf32> -> vector<4x32x8xf32>
    %117 = vector.shape_cast %116 : vector<4x32x8xf32> to vector<8x16x8xf32>
    %118 = vector.extract_strided_slice %97 {offsets = [0, 32], sizes = [32, 8], strides = [1, 1]} : vector<32x64xf32> to vector<32x8xf32>
    %119 = vector.extract_strided_slice %97 {offsets = [0, 40], sizes = [32, 8], strides = [1, 1]} : vector<32x64xf32> to vector<32x8xf32>
    %120 = vector.extract_strided_slice %97 {offsets = [0, 48], sizes = [32, 8], strides = [1, 1]} : vector<32x64xf32> to vector<32x8xf32>
    %121 = vector.extract_strided_slice %97 {offsets = [0, 56], sizes = [32, 8], strides = [1, 1]} : vector<32x64xf32> to vector<32x8xf32>
    %122 = vector.shape_cast %118 : vector<32x8xf32> to vector<1x32x8xf32>
    %123 = vector.shape_cast %119 : vector<32x8xf32> to vector<1x32x8xf32>
    %124 = vector.shape_cast %120 : vector<32x8xf32> to vector<1x32x8xf32>
    %125 = vector.shape_cast %121 : vector<32x8xf32> to vector<1x32x8xf32>
    %126 = tpu.concatenate %122, %123, %124, %125 in 0 : vector<1x32x8xf32>, vector<1x32x8xf32>, vector<1x32x8xf32>, vector<1x32x8xf32> -> vector<4x32x8xf32>
    %127 = vector.shape_cast %126 : vector<4x32x8xf32> to vector<8x16x8xf32>
    "tpu.trace_start"() <{level = 10 : i32, message = "nte,nse->nts"}> : () -> ()
    %cst_32 = arith.constant dense<0.000000e+00> : vector<8x8x16xf32>
    %128 = tpu.matmul %107, %117, %cst_32 {dimension_numbers = #tpu.dot_dimension_numbers<[2], [2], [1], [1], [0, 0, 0, 1, 1, 1], [0], [0]>} : vector<8x8x8xf32>, vector<8x16x8xf32>, vector<8x8x16xf32> -> vector<8x8x16xf32>
    "tpu.trace_stop"() : () -> ()
    %cst_33 = arith.constant dense<0xFF800000> : vector<8x8xf32>
    %129 = vector.multi_reduction <maximumf>, %128, %cst_33 [2] : vector<8x8x16xf32> to vector<8x8xf32>
    %130 = vector.shape_cast %129 : vector<8x8xf32> to vector<8x8x1xf32>
    %131 = vector.broadcast %130 : vector<8x8x1xf32> to vector<8x8x16xf32>
    %132 = arith.subf %128, %131 : vector<8x8x16xf32>
    %133 = math.exp %132 : vector<8x8x16xf32>
    %cst_34 = arith.constant dense<0.000000e+00> : vector<8x8xf32>
    %134 = vector.multi_reduction <add>, %133, %cst_34 [2] : vector<8x8x16xf32> to vector<8x8xf32>
    %135 = vector.shape_cast %134 : vector<8x8xf32> to vector<8x8x1xf32>
    %136 = vector.broadcast %135 : vector<8x8x1xf32> to vector<8x8x16xf32>
    %137 = arith.divf %133, %136 : vector<8x8x16xf32>
    "tpu.trace_start"() <{level = 10 : i32, message = "nts,nse->nte"}> : () -> ()
    %cst_35 = arith.constant dense<0.000000e+00> : vector<8x8x8xf32>
    %138 = tpu.matmul %137, %127, %cst_35 {dimension_numbers = #tpu.dot_dimension_numbers<[2], [1], [1], [2], [0, 0, 0, 1, 1, 2], [0], [0]>} : vector<8x8x16xf32>, vector<8x16x8xf32>, vector<8x8x8xf32> -> vector<8x8x8xf32>
    "tpu.trace_stop"() : () -> ()
    %139 = vector.shape_cast %138 : vector<8x8x8xf32> to vector<4x16x8xf32>
    %140 = vector.shape_cast %6 : vector<32x32xf32> to vector<4x8x32xf32>
    "tpu.trace_start"() <{level = 10 : i32, message = "hne,hed->hnd"}> : () -> ()
    %cst_36 = arith.constant dense<0.000000e+00> : vector<4x16x32xf32>
    %141 = tpu.matmul %139, %140, %cst_36 {dimension_numbers = #tpu.dot_dimension_numbers<[2], [1], [1], [2], [0, 0, 0, 1, 1, 2], [0], [0]>} : vector<4x16x8xf32>, vector<4x8x32xf32>, vector<4x16x32xf32> -> vector<4x16x32xf32>
    "tpu.trace_stop"() : () -> ()
    %cst_37 = arith.constant dense<0.000000e+00> : vector<16x32xf32>
    %142 = vector.multi_reduction <add>, %141, %cst_37 [0] : vector<4x16x32xf32> to vector<16x32xf32>
    %143 = vector.broadcast %14 : vector<1x32xf32> to vector<16x32xf32>
    %144 = arith.addf %142, %143 : vector<16x32xf32>
    %145 = vector.shape_cast %137 : vector<8x8x16xf32> to vector<4x16x16xf32>
    %cst_38 = arith.constant dense<0.000000e+00> : vector<16x16xf32>
    %146 = vector.multi_reduction <add>, %145, %cst_38 [0] : vector<4x16x16xf32> to vector<16x16xf32>
    %cst_39 = arith.constant 2.500000e-01 : f32
    %147 = vector.broadcast %cst_39 : f32 to vector<16x16xf32>
    %148 = arith.mulf %146, %147 : vector<16x16xf32>
    %149 = arith.addf %91, %144 : vector<16x32xf32>
    %150 = vector.extract_strided_slice %9 {offsets = [2, 0], sizes = [1, 32], strides = [1, 1]} : vector<6x32xf32> to vector<1x32xf32>
    %151 = vector.extract_strided_slice %9 {offsets = [3, 0], sizes = [1, 32], strides = [1, 1]} : vector<6x32xf32> to vector<1x32xf32>
    %cst_40 = arith.constant dense<0.000000e+00> : vector<16xf32>
    %152 = vector.multi_reduction <add>, %149, %cst_40 [1] : vector<16x32xf32> to vector<16xf32>
    %153 = vector.shape_cast %152 : vector<16xf32> to vector<16x1xf32>
    %cst_41 = arith.constant 3.200000e+01 : f32
    %154 = vector.broadcast %cst_41 : f32 to vector<16x1xf32>
    %155 = arith.divf %153, %154 : vector<16x1xf32>
    %156 = vector.broadcast %155 : vector<16x1xf32> to vector<16x32xf32>
    %157 = arith.subf %149, %156 : vector<16x32xf32>
    %158 = arith.mulf %157, %157 : vector<16x32xf32>
    %cst_42 = arith.constant dense<0.000000e+00> : vector<16xf32>
    %159 = vector.multi_reduction <add>, %158, %cst_42 [1] : vector<16x32xf32> to vector<16xf32>
    %160 = vector.shape_cast %159 : vector<16xf32> to vector<16x1xf32>
    %cst_43 = arith.constant 3.200000e+01 : f32
    %161 = vector.broadcast %cst_43 : f32 to vector<16x1xf32>
    %162 = arith.divf %160, %161 : vector<16x1xf32>
    %163 = vector.broadcast %155 : vector<16x1xf32> to vector<16x32xf32>
    %164 = arith.subf %149, %163 : vector<16x32xf32>
    %cst_44 = arith.constant 9.99999974E-6 : f32
    %165 = vector.broadcast %cst_44 : f32 to vector<16x1xf32>
    %166 = arith.addf %162, %165 : vector<16x1xf32>
    %167 = math.rsqrt %166 : vector<16x1xf32>
    %168 = vector.broadcast %167 : vector<16x1xf32> to vector<16x32xf32>
    %169 = arith.mulf %164, %168 : vector<16x32xf32>
    %170 = vector.broadcast %150 : vector<1x32xf32> to vector<16x32xf32>
    %171 = arith.mulf %169, %170 : vector<16x32xf32>
    %172 = vector.broadcast %151 : vector<1x32xf32> to vector<16x32xf32>
    %173 = arith.addf %171, %172 : vector<16x32xf32>
    %cst_45 = arith.constant dense<0.000000e+00> : vector<16x64xf32>
    %174 = tpu.matmul %173, %7, %cst_45 {dimension_numbers = #tpu.dot_dimension_numbers<[1], [0], [0], [1], [0, 0, 1, 1], [], []>} : vector<16x32xf32>, vector<32x64xf32>, vector<16x64xf32> -> vector<16x64xf32>
    %175 = vector.broadcast %15 : vector<1x64xf32> to vector<16x64xf32>
    %176 = arith.addf %174, %175 : vector<16x64xf32>
    %cst_46 = arith.constant 0.000000e+00 : f32
    %177 = vector.broadcast %cst_46 : f32 to vector<16x64xf32>
    %178 = arith.maximumf %176, %177 : vector<16x64xf32>
    %cst_47 = arith.constant dense<0.000000e+00> : vector<16x32xf32>
    %179 = tpu.matmul %178, %8, %cst_47 {dimension_numbers = #tpu.dot_dimension_numbers<[1], [0], [0], [1], [0, 0, 1, 1], [], []>} : vector<16x64xf32>, vector<64x32xf32>, vector<16x32xf32> -> vector<16x32xf32>
    %180 = vector.broadcast %16 : vector<1x32xf32> to vector<16x32xf32>
    %181 = arith.addf %179, %180 : vector<16x32xf32>
    %182 = arith.addf %173, %181 : vector<16x32xf32>
    %183 = vector.extract_strided_slice %9 {offsets = [4, 0], sizes = [1, 32], strides = [1, 1]} : vector<6x32xf32> to vector<1x32xf32>
    %184 = vector.extract_strided_slice %9 {offsets = [5, 0], sizes = [1, 32], strides = [1, 1]} : vector<6x32xf32> to vector<1x32xf32>
    %cst_48 = arith.constant dense<0.000000e+00> : vector<16xf32>
    %185 = vector.multi_reduction <add>, %182, %cst_48 [1] : vector<16x32xf32> to vector<16xf32>
    %186 = vector.shape_cast %185 : vector<16xf32> to vector<16x1xf32>
    %cst_49 = arith.constant 3.200000e+01 : f32
    %187 = vector.broadcast %cst_49 : f32 to vector<16x1xf32>
    %188 = arith.divf %186, %187 : vector<16x1xf32>
    %189 = vector.broadcast %188 : vector<16x1xf32> to vector<16x32xf32>
    %190 = arith.subf %182, %189 : vector<16x32xf32>
    %191 = arith.mulf %190, %190 : vector<16x32xf32>
    %cst_50 = arith.constant dense<0.000000e+00> : vector<16xf32>
    %192 = vector.multi_reduction <add>, %191, %cst_50 [1] : vector<16x32xf32> to vector<16xf32>
    %193 = vector.shape_cast %192 : vector<16xf32> to vector<16x1xf32>
    %cst_51 = arith.constant 3.200000e+01 : f32
    %194 = vector.broadcast %cst_51 : f32 to vector<16x1xf32>
    %195 = arith.divf %193, %194 : vector<16x1xf32>
    %196 = vector.broadcast %188 : vector<16x1xf32> to vector<16x32xf32>
    %197 = arith.subf %182, %196 : vector<16x32xf32>
    %cst_52 = arith.constant 9.99999974E-6 : f32
    %198 = vector.broadcast %cst_52 : f32 to vector<16x1xf32>
    %199 = arith.addf %195, %198 : vector<16x1xf32>
    %200 = math.rsqrt %199 : vector<16x1xf32>
    %201 = vector.broadcast %200 : vector<16x1xf32> to vector<16x32xf32>
    %202 = arith.mulf %197, %201 : vector<16x32xf32>
    %203 = vector.broadcast %183 : vector<1x32xf32> to vector<16x32xf32>
    %204 = arith.mulf %202, %203 : vector<16x32xf32>
    %205 = vector.broadcast %184 : vector<1x32xf32> to vector<16x32xf32>
    %206 = arith.addf %204, %205 : vector<16x32xf32>
    %c0_53 = arith.constant 0 : index
    %c0_54 = arith.constant 0 : index
    %207 = vector.load %arg3[%c0_53, %c0_54] : memref<16x32xf32, #tpu.memory_space<vmem>>, vector<16x32xf32>
    tpu.vector_store %arg3[%c0_53, %c0_54], %206 {strides = array<i32>} : memref<16x32xf32, #tpu.memory_space<vmem>>, vector<16x32xf32>,
    %c0_55 = arith.constant 0 : index
    %c0_56 = arith.constant 0 : index
    %208 = vector.load %arg4[%c0_55, %c0_56] : memref<16x16xf32, #tpu.memory_space<vmem>>, vector<16x16xf32>
    tpu.vector_store %arg4[%c0_55, %c0_56], %148 {strides = array<i32>} : memref<16x16xf32, #tpu.memory_space<vmem>>, vector<16x16xf32>,
    return
  }
}

</mosaic_0001>

<llo_original>
// kernel: transformer_decoder_layer.1
$region0: #{transformer_decoder_layer.1}
  #allocation0 [shape = 'u32[]', space=smem, size = 0x4, offset = 0x4, fixed_abs, tag = 'smem constant byte address 0x4 - core index']
  #allocation1 [shape = 'u32[72,128]{1,0:T(1,128)}', space=vmem, size = 0x9000, scoped, tag = 'internal scratch']
  %s0 = inlined_call_operand.vmem [shape: f32[16,32], index: 0, kind: input, shape index: {}]
  %s1 = inlined_call_operand.vmem [shape: f32[32,32], index: 1, kind: input, shape index: {}]
  %s2 = inlined_call_operand.vmem [shape: f32[272,128], index: 2, kind: input, shape index: {}]
  %s3 = inlined_call_operand.hbm [shape: f32[16,32], index: 3, kind: output, shape index: {0}]
  %s4 = inlined_call_operand.hbm [shape: f32[16,16], index: 4, kind: output, shape index: {1}]
  %5 = xla_tuple %s3, %s4
  %s6 = sld [smem:[#allocation0]]
  $region30: #{transformer_decoder_layer.1} parent=0
    _
  %s8 = ssub.s32 1, %s6
  %s9 = scalar_select 0, %s8, %s6
  $region1: #{transformer_decoder_layer.1} parent=0
    #allocation2 [shape = 'u8[8192]{0}', space=vmem, size = 0x2000, scoped, tag = 'output window, operand 0, single buffered']
    #allocation3 [shape = 's32[1]{0}', space=sflag, size = 0x4, scoped, tag = 'scoped memory for transformer_decoder_layer.1']
    #allocation4 [shape = 'u8[8192]{0}', space=vmem, size = 0x2000, scoped, tag = 'output window, operand 1, single buffered']
    #allocation5 [shape = 's32[1]{0}', space=sflag, size = 0x4, scoped, tag = 'scoped memory for transformer_decoder_layer.1']
    %10 = vsyncpa [#allocation3], 0
    %11 = vsyncpa [#allocation5], 0
    // Predicated region
    $region2: #{transformer_decoder_layer.1} parent=1 // pred_check
      _
    $region3: #{transformer_decoder_layer.1} parent=1 // pred_check_branch
      %13 = sbr.rel (0) target = $region5
    $region4: #{transformer_decoder_layer.1} parent=1 // pred_region
      _
    $region5: #{transformer_decoder_layer.1} parent=1 // pred_fallthru
      _
    // Predicated region
    $region6: #{transformer_decoder_layer.1} parent=1 // pred_check
      _
    $region7: #{transformer_decoder_layer.1} parent=1 // pred_check_branch
      %15 = sbr.rel (0) target = $region9
    $region8: #{transformer_decoder_layer.1} parent=1 // pred_region
      _
    $region9: #{transformer_decoder_layer.1} parent=1 // pred_fallthru
      _
    // Predicated region
    $region10: #{transformer_decoder_layer.1} parent=1 // pred_check
      _
    $region11: #{transformer_decoder_layer.1} parent=1 // pred_check_branch
      %17 = sbr.rel (0) target = $region13
    $region12: #{transformer_decoder_layer.1} parent=1 // pred_region
      _
    $region13: #{transformer_decoder_layer.1} parent=1 // pred_fallthru
      _
    %v18 = vld [vmem:[%s0] sm:$0xff]
    %v19 = vld [vmem:[%s0 + $0x8] sm:$0xff]
    %v20 = vld [vmem:[%s1] sm:$0xff]
    %v21 = vld [vmem:[%s1 + $0x8] sm:$0xff]
    %v22 = vld [vmem:[%s1 + $0x10] sm:$0xff]
    %v23 = vld [vmem:[%s1 + $0x18] sm:$0xff]
    %v24 = vld [vmem:[%s2] sm:$0xff]
    %v25 = vld [vmem:[%s2 + $0x8] sm:$0xff]
    %v26 = vld [vmem:[%s2 + $0x10] sm:$0xff]
    %v27 = vld [vmem:[%s2 + $0x18] sm:$0xff]
    %v28 = vld [vmem:[%s2 + $0x20] sm:$0xff]
    %v29 = vld [vmem:[%s2 + $0x28] sm:$0xff]
    %v30 = vld [vmem:[%s2 + $0x30] sm:$0xff]
    %v31 = vld [vmem:[%s2 + $0x38] sm:$0xff]
    %v32 = vld [vmem:[%s2 + $0x40] sm:$0xff]
    %v33 = vld [vmem:[%s2 + $0x48] sm:$0xff]
    %v34 = vld [vmem:[%s2 + $0x50] sm:$0xff]
    %v35 = vld [vmem:[%s2 + $0x58] sm:$0xff]
    %v36 = vld [vmem:[%s2 + $0x60] sm:$0xff]
    %v37 = vld [vmem:[%s2 + $0x68] sm:$0xff]
    %v38 = vld [vmem:[%s2 + $0x70] sm:$0xff]
    %v39 = vld [vmem:[%s2 + $0x78] sm:$0xff]
    %v40 = vld [vmem:[%s2 + $0x80] sm:$0xff]
    %v41 = vld [vmem:[%s2 + $0x88] sm:$0xff]
    %v42 = vld [vmem:[%s2 + $0x90] sm:$0xff]
    %v43 = vld [vmem:[%s2 + $0x98] sm:$0xff]
    %v44 = vld [vmem:[%s2 + $0xa0] sm:$0xff]
    %v45 = vld [vmem:[%s2 + $0xa8] sm:$0xff]
    %v46 = vld [vmem:[%s2 + $0xb0] sm:$0xff]
    %v47 = vld [vmem:[%s2 + $0xb8] sm:$0xff]
    %v48 = vld [vmem:[%s2 + $0xc0] sm:$0xff]
    %v49 = vld [vmem:[%s2 + $0xc8] sm:$0xff]
    %v50 = vld [vmem:[%s2 + $0xd0] sm:$0xff]
    %v51 = vld [vmem:[%s2 + $0xd8] sm:$0xff]
    %v52 = vld [vmem:[%s2 + $0xe0] sm:$0xff]
    %v53 = vld [vmem:[%s2 + $0xe8] sm:$0xff]
    %v54 = vld [vmem:[%s2 + $0xf0] sm:$0xff]
    %v55 = vld [vmem:[%s2 + $0xf8] sm:$0xff]
    %v56 = vld [vmem:[%s2 + $0x100] sm:$0x3f]
    %v57 = vld [vmem:[%s2 + $0x106] sm:$0x1]
    %v58 = vld [vmem:[%s2 + $0x107] sm:$0x1]
    %v59 = vld [vmem:[%s2 + $0x108] sm:$0x1]
    %v60 = vld [vmem:[%s2 + $0x109] sm:$0x1]
    %v61 = vld [vmem:[%s2 + $0x10a] sm:$0x1]
    %v62 = vld [vmem:[%s2 + $0x10b] sm:$0x1]
    %v63 = vld [vmem:[%s2 + $0x10c] sm:$0x1]
    %v64 = vperm.slane %v57, 0
    %vm65 = vcmask 261120
    %v67 = vsel %vm65, %v18, 0
    %v70 = vsel %vm65, %v19, 0
    %72 = vmatpush.msra.mxu0 0.0
    %73 = vmatpush.msra.mxu0 0.0
    %74 = vmatpush.msra.mxu0 0.0
    %75 = vmatpush.msra.mxu0 0.0
    %76 = vmatpush.msra.mxu0 0.0
    %77 = vmatpush.msra.mxu0 0.0
    %78 = vmatpush.msra.mxu0 0.0
    %79 = vmatpush.msra.mxu0 0.0
    %80 = vmatpush.msra.mxu0 0.0
    %81 = vmatpush.msra.mxu0 0.0
    %82 = vmatpush.msra.mxu0 0.0
    %83 = vmatpush.msra.mxu0 0.0
    %84 = vmatpush.msra.mxu0 %v27
    %85 = vmatpush.msra.mxu0 %v26
    %86 = vmatpush.msra.mxu0 %v25
    %87 = vmatpush.msra.mxu0 %v24
    %88 = vmatmul.f32.gmra.mxu0 %v67
    %v89 = vpop.f32.mrf.mxu0
    %v90 = vadd.f32 %v64, %v89
    %91 = vmatmul.f32.gmra.mxu0 %v70
    %v92 = vpop.f32.mrf.mxu0
    %v93 = vadd.f32 %v64, %v92
    %94 = vdwg.mxu0
    %97 = vrot.lane.b32.xlu0 %v90, 120
    %v98 = vpop.permute.xlu0 %97
    %99 = vrot.lane.b32.xlu0 %v93, 120
    %v100 = vpop.permute.xlu0 %99
    %101 = vrot.lane.b32.xlu0 %v90, 112
    %v102 = vpop.permute.xlu0 %101
    %103 = vrot.lane.b32.xlu0 %v93, 112
    %v104 = vpop.permute.xlu0 %103
    %105 = vrot.lane.b32.xlu0 %v90, 104
    %v106 = vpop.permute.xlu0 %105
    %107 = vrot.lane.b32.xlu0 %v93, 104
    %v108 = vpop.permute.xlu0 %107
    %109 = vrot.lane.b32.xlu0 %v90, 96
    %v110 = vpop.permute.xlu0 %109
    %vm111 = vcmask 64512
    %v112 = vsel %vm111, %v90, 0
    %v114 = vsel %vm111, %v110, 0
    %116 = vmatpush.xpose.msra.mxu0 0.0
    %117 = vmatpush.xpose.msra.mxu0 0.0
    %118 = vmatpush.xpose.msra.mxu0 0.0
    %119 = vmatpush.xpose.msra.mxu0 0.0
    %120 = vmatpush.xpose.msra.mxu0 0.0
    %121 = vmatpush.xpose.msra.mxu0 0.0
    %122 = vmatpush.xpose.msra.mxu0 0.0
    %123 = vmatpush.xpose.msra.mxu0 0.0
    %124 = vmatpush.xpose.msra.mxu0 0.0
    %125 = vmatpush.xpose.msra.mxu0 0.0
    %126 = vmatpush.xpose.msra.mxu0 0.0
    %127 = vmatpush.xpose.msra.mxu0 0.0
    %128 = vmatpush.xpose.msra.mxu0 0.0
    %129 = vmatpush.xpose.msra.mxu0 0.0
    %130 = vmatpush.xpose.msra.mxu0 0.0
    %131 = vmatpush.xpose.msra.mxu0 %v114
    %132 = vmatmul.f32.gmra.mxu0 %v112
    %v133 = vpop.f32.mrf.mxu0
    %v134 = vadd.f32 0.0, %v133
    %135 = vdwg.mxu0
    %136 = vrot.lane.b32.xlu0 %v93, 96
    %v137 = vpop.permute.xlu0 %136
    %v138 = vsel %vm111, %v93, 0
    %v140 = vsel %vm111, %v137, 0
    %142 = vmatpush.xpose.msra.mxu0 0.0
    %143 = vmatpush.xpose.msra.mxu0 0.0
    %144 = vmatpush.xpose.msra.mxu0 0.0
    %145 = vmatpush.xpose.msra.mxu0 0.0
    %146 = vmatpush.xpose.msra.mxu0 0.0
    %147 = vmatpush.xpose.msra.mxu0 0.0
    %148 = vmatpush.xpose.msra.mxu0 0.0
    %149 = vmatpush.xpose.msra.mxu0 0.0
    %150 = vmatpush.xpose.msra.mxu0 0.0
    %151 = vmatpush.xpose.msra.mxu0 0.0
    %152 = vmatpush.xpose.msra.mxu0 0.0
    %153 = vmatpush.xpose.msra.mxu0 0.0
    %154 = vmatpush.xpose.msra.mxu0 0.0
    %155 = vmatpush.xpose.msra.mxu0 0.0
    %156 = vmatpush.xpose.msra.mxu0 0.0
    %157 = vmatpush.xpose.msra.mxu0 %v140
    %158 = vmatmul.f32.gmra.mxu0 %v138
    %v159 = vpop.f32.mrf.mxu0
    %v160 = vadd.f32 0.0, %v159
    %161 = vdwg.mxu0
    %162 = vrot.lane.b32.xlu0 %v98, 96
    %v163 = vpop.permute.xlu0 %162
    %v164 = vsel %vm111, %v98, 0
    %v166 = vsel %vm111, %v163, 0
    %168 = vmatpush.xpose.msra.mxu0 0.0
    %169 = vmatpush.xpose.msra.mxu0 0.0
    %170 = vmatpush.xpose.msra.mxu0 0.0
    %171 = vmatpush.xpose.msra.mxu0 0.0
    %172 = vmatpush.xpose.msra.mxu0 0.0
    %173 = vmatpush.xpose.msra.mxu0 0.0
    %174 = vmatpush.xpose.msra.mxu0 0.0
    %175 = vmatpush.xpose.msra.mxu0 0.0
    %176 = vmatpush.xpose.msra.mxu0 0.0
    %177 = vmatpush.xpose.msra.mxu0 0.0
    %178 = vmatpush.xpose.msra.mxu0 0.0
    %179 = vmatpush.xpose.msra.mxu0 0.0
    %180 = vmatpush.xpose.msra.mxu0 0.0
    %181 = vmatpush.xpose.msra.mxu0 0.0
    %182 = vmatpush.xpose.msra.mxu0 0.0
    %183 = vmatpush.xpose.msra.mxu0 %v166
    %184 = vmatmul.f32.gmra.mxu0 %v164
    %v185 = vpop.f32.mrf.mxu0
    %v186 = vadd.f32 0.0, %v185
    %187 = vdwg.mxu0
    %188 = vrot.lane.b32.xlu0 %v100, 96
    %v189 = vpop.permute.xlu0 %188
    %v190 = vsel %vm111, %v100, 0
    %v192 = vsel %vm111, %v189, 0
    %194 = vmatpush.xpose.msra.mxu0 0.0
    %195 = vmatpush.xpose.msra.mxu0 0.0
    %196 = vmatpush.xpose.msra.mxu0 0.0
    %197 = vmatpush.xpose.msra.mxu0 0.0
    %198 = vmatpush.xpose.msra.mxu0 0.0
    %199 = vmatpush.xpose.msra.mxu0 0.0
    %200 = vmatpush.xpose.msra.mxu0 0.0
    %201 = vmatpush.xpose.msra.mxu0 0.0
    %202 = vmatpush.xpose.msra.mxu0 0.0
    %203 = vmatpush.xpose.msra.mxu0 0.0
    %204 = vmatpush.xpose.msra.mxu0 0.0
    %205 = vmatpush.xpose.msra.mxu0 0.0
    %206 = vmatpush.xpose.msra.mxu0 0.0
    %207 = vmatpush.xpose.msra.mxu0 0.0
    %208 = vmatpush.xpose.msra.mxu0 0.0
    %209 = vmatpush.xpose.msra.mxu0 %v192
    %210 = vmatmul.f32.gmra.mxu0 %v190
    %v211 = vpop.f32.mrf.mxu0
    %v212 = vadd.f32 0.0, %v211
    %213 = vdwg.mxu0
    %214 = vrot.lane.b32.xlu0 %v102, 96
    %v215 = vpop.permute.xlu0 %214
    %v216 = vsel %vm111, %v102, 0
    %v218 = vsel %vm111, %v215, 0
    %220 = vmatpush.xpose.msra.mxu0 0.0
    %221 = vmatpush.xpose.msra.mxu0 0.0
    %222 = vmatpush.xpose.msra.mxu0 0.0
    %223 = vmatpush.xpose.msra.mxu0 0.0
    %224 = vmatpush.xpose.msra.mxu0 0.0
    %225 = vmatpush.xpose.msra.mxu0 0.0
    %226 = vmatpush.xpose.msra.mxu0 0.0
    %227 = vmatpush.xpose.msra.mxu0 0.0
    %228 = vmatpush.xpose.msra.mxu0 0.0
    %229 = vmatpush.xpose.msra.mxu0 0.0
    %230 = vmatpush.xpose.msra.mxu0 0.0
    %231 = vmatpush.xpose.msra.mxu0 0.0
    %232 = vmatpush.xpose.msra.mxu0 0.0
    %233 = vmatpush.xpose.msra.mxu0 0.0
    %234 = vmatpush.xpose.msra.mxu0 0.0
    %235 = vmatpush.xpose.msra.mxu0 %v218
    %236 = vmatmul.f32.gmra.mxu0 %v216
    %v237 = vpop.f32.mrf.mxu0
    %v238 = vadd.f32 0.0, %v237
    %239 = vdwg.mxu0
    %240 = vrot.lane.b32.xlu0 %v104, 96
    %v241 = vpop.permute.xlu0 %240
    %v242 = vsel %vm111, %v104, 0
    %v244 = vsel %vm111, %v241, 0
    %246 = vmatpush.xpose.msra.mxu0 0.0
    %247 = vmatpush.xpose.msra.mxu0 0.0
    %248 = vmatpush.xpose.msra.mxu0 0.0
    %249 = vmatpush.xpose.msra.mxu0 0.0
    %250 = vmatpush.xpose.msra.mxu0 0.0
    %251 = vmatpush.xpose.msra.mxu0 0.0
    %252 = vmatpush.xpose.msra.mxu0 0.0
    %253 = vmatpush.xpose.msra.mxu0 0.0
    %254 = vmatpush.xpose.msra.mxu0 0.0
    %255 = vmatpush.xpose.msra.mxu0 0.0
    %256 = vmatpush.xpose.msra.mxu0 0.0
    %257 = vmatpush.xpose.msra.mxu0 0.0
    %258 = vmatpush.xpose.msra.mxu0 0.0
    %259 = vmatpush.xpose.msra.mxu0 0.0
    %260 = vmatpush.xpose.msra.mxu0 0.0
    %261 = vmatpush.xpose.msra.mxu0 %v244
    %262 = vmatmul.f32.gmra.mxu0 %v242
    %v263 = vpop.f32.mrf.mxu0
    %v264 = vadd.f32 0.0, %v263
    %265 = vdwg.mxu0
    %266 = vrot.lane.b32.xlu0 %v106, 96
    %v267 = vpop.permute.xlu0 %266
    %v268 = vsel %vm111, %v106, 0
    %v270 = vsel %vm111, %v267, 0
    %272 = vmatpush.xpose.msra.mxu0 0.0
    %273 = vmatpush.xpose.msra.mxu0 0.0
    %274 = vmatpush.xpose.msra.mxu0 0.0
    %275 = vmatpush.xpose.msra.mxu0 0.0
    %276 = vmatpush.xpose.msra.mxu0 0.0
    %277 = vmatpush.xpose.msra.mxu0 0.0
    %278 = vmatpush.xpose.msra.mxu0 0.0
    %279 = vmatpush.xpose.msra.mxu0 0.0
    %280 = vmatpush.xpose.msra.mxu0 0.0
    %281 = vmatpush.xpose.msra.mxu0 0.0
    %282 = vmatpush.xpose.msra.mxu0 0.0
    %283 = vmatpush.xpose.msra.mxu0 0.0
    %284 = vmatpush.xpose.msra.mxu0 0.0
    %285 = vmatpush.xpose.msra.mxu0 0.0
    %286 = vmatpush.xpose.msra.mxu0 0.0
    %287 = vmatpush.xpose.msra.mxu0 %v270
    %288 = vmatmul.f32.gmra.mxu0 %v268
    %v289 = vpop.f32.mrf.mxu0
    %v290 = vadd.f32 0.0, %v289
    %291 = vdwg.mxu0
    %292 = vrot.lane.b32.xlu0 %v108, 96
    %v293 = vpop.permute.xlu0 %292
    %v294 = vsel %vm111, %v108, 0
    %v296 = vsel %vm111, %v293, 0
    %298 = vmatpush.xpose.msra.mxu0 0.0
    %299 = vmatpush.xpose.msra.mxu0 0.0
    %300 = vmatpush.xpose.msra.mxu0 0.0
    %301 = vmatpush.xpose.msra.mxu0 0.0
    %302 = vmatpush.xpose.msra.mxu0 0.0
    %303 = vmatpush.xpose.msra.mxu0 0.0
    %304 = vmatpush.xpose.msra.mxu0 0.0
    %305 = vmatpush.xpose.msra.mxu0 0.0
    %306 = vmatpush.xpose.msra.mxu0 0.0
    %307 = vmatpush.xpose.msra.mxu0 0.0
    %308 = vmatpush.xpose.msra.mxu0 0.0
    %309 = vmatpush.xpose.msra.mxu0 0.0
    %310 = vmatpush.xpose.msra.mxu0 0.0
    %311 = vmatpush.xpose.msra.mxu0 0.0
    %312 = vmatpush.xpose.msra.mxu0 0.0
    %313 = vmatpush.xpose.msra.mxu0 %v296
    %314 = vmatmul.f32.gmra.mxu0 %v294
    %v315 = vpop.f32.mrf.mxu0
    %v316 = vadd.f32 0.0, %v315
    %317 = vdwg.mxu0
    %v318 = vsel %vm111, %v134, -inf
    %319 = vmax.xlane.f32.xlu0 %v318
    %v320 = vpop.xlane.xlu0 %319
    %v321 = vsel %vm111, %v160, -inf
    %322 = vmax.xlane.f32.xlu0 %v321
    %v323 = vpop.xlane.xlu0 %322
    %v324 = vsel %vm111, %v186, -inf
    %325 = vmax.xlane.f32.xlu0 %v324
    %v326 = vpop.xlane.xlu0 %325
    %v327 = vsel %vm111, %v212, -inf
    %328 = vmax.xlane.f32.xlu0 %v327
    %v329 = vpop.xlane.xlu0 %328
    %v330 = vsel %vm111, %v238, -inf
    %331 = vmax.xlane.f32.xlu0 %v330
    %v332 = vpop.xlane.xlu0 %331
    %v333 = vsel %vm111, %v264, -inf
    %334 = vmax.xlane.f32.xlu0 %v333
    %v335 = vpop.xlane.xlu0 %334
    %v336 = vsel %vm111, %v290, -inf
    %337 = vmax.xlane.f32.xlu0 %v336
    %v338 = vpop.xlane.xlu0 %337
    %v339 = vsel %vm111, %v316, -inf
    %340 = vmax.xlane.f32.xlu0 %v339
    %v341 = vpop.xlane.xlu0 %340
    %v342 = vsub.f32 %v134, %v320
    %v343 = vsub.f32 %v160, %v323
    %v344 = vsub.f32 %v186, %v326
    %v345 = vsub.f32 %v212, %v329
    %v346 = vsub.f32 %v238, %v332
    %v347 = vsub.f32 %v264, %v335
    %v348 = vsub.f32 %v290, %v338
    %v349 = vsub.f32 %v316, %v341
    %v350 = vmul.f32 %v342, 1.442695
    %v351 = vpow.pop %v350
    %v352 = vmul.f32 %v343, 1.442695
    %v353 = vpow.pop %v352
    %v354 = vmul.f32 %v344, 1.442695
    %v355 = vpow.pop %v354
    %v356 = vmul.f32 %v345, 1.442695
    %v357 = vpow.pop %v356
    %v358 = vmul.f32 %v346, 1.442695
    %v359 = vpow.pop %v358
    %v360 = vmul.f32 %v347, 1.442695
    %v361 = vpow.pop %v360
    %v362 = vmul.f32 %v348, 1.442695
    %v363 = vpow.pop %v362
    %v364 = vmul.f32 %v349, 1.442695
    %v365 = vpow.pop %v364
    %v366 = vsel %vm111, %v351, 0.0
    %367 = vadd.xlane.f32.xlu0 %v366
    %v368 = vpop.xlane.xlu0 %367
    %v369 = vsel %vm111, %v353, 0.0
    %370 = vadd.xlane.f32.xlu0 %v369
    %v371 = vpop.xlane.xlu0 %370
    %v372 = vsel %vm111, %v355, 0.0
    %373 = vadd.xlane.f32.xlu0 %v372
    %v374 = vpop.xlane.xlu0 %373
    %v375 = vsel %vm111, %v357, 0.0
    %376 = vadd.xlane.f32.xlu0 %v375
    %v377 = vpop.xlane.xlu0 %376
    %v378 = vsel %vm111, %v359, 0.0
    %379 = vadd.xlane.f32.xlu0 %v378
    %v380 = vpop.xlane.xlu0 %379
    %v381 = vsel %vm111, %v361, 0.0
    %382 = vadd.xlane.f32.xlu0 %v381
    %v383 = vpop.xlane.xlu0 %382
    %v384 = vsel %vm111, %v363, 0.0
    %385 = vadd.xlane.f32.xlu0 %v384
    %v386 = vpop.xlane.xlu0 %385
    %v387 = vsel %vm111, %v365, 0.0
    %388 = vadd.xlane.f32.xlu0 %v387
    %v389 = vpop.xlane.xlu0 %388
    %v390 = vrcp.pop %v368
    %v391 = vmul.f32 %v368, %v390
    %v392 = vsub.f32 1.0, %v391
    %v393 = vmul.f32 %v390, %v392
    %v394 = vadd.f32 %v390, %v393
    %vm395 = vweird.f32 %v368
    %vm396 = vweird.f32 %v390
    %vm397 = vmor %vm395, %vm396
    %v398 = vsel %vm397, %v390, %v394
    %v399 = vand.u32 2147483647, %v368
    %vm400 = vcmp.eq.f32.partialorder %v399, 8.507059e+37
    %v401 = vand.u32 %v368, 2147483648
    %v402 = vor.u32 1.1754944e-38, %v401
    %v403 = vsel %vm400, %v402, %v398
    %v404 = vmul.f32 %v351, %v403
    %v405 = vrcp.pop %v371
    %v406 = vmul.f32 %v371, %v405
    %v407 = vsub.f32 1.0, %v406
    %v408 = vmul.f32 %v405, %v407
    %v409 = vadd.f32 %v405, %v408
    %vm410 = vweird.f32 %v371
    %vm411 = vweird.f32 %v405
    %vm412 = vmor %vm410, %vm411
    %v413 = vsel %vm412, %v405, %v409
    %v414 = vand.u32 2147483647, %v371
    %vm415 = vcmp.eq.f32.partialorder %v414, 8.507059e+37
    %v416 = vand.u32 %v371, 2147483648
    %v417 = vor.u32 1.1754944e-38, %v416
    %v418 = vsel %vm415, %v417, %v413
    %v419 = vmul.f32 %v353, %v418
    %v420 = vrcp.pop %v374
    %v421 = vmul.f32 %v374, %v420
    %v422 = vsub.f32 1.0, %v421
    %v423 = vmul.f32 %v420, %v422
    %v424 = vadd.f32 %v420, %v423
    %vm425 = vweird.f32 %v374
    %vm426 = vweird.f32 %v420
    %vm427 = vmor %vm425, %vm426
    %v428 = vsel %vm427, %v420, %v424
    %v429 = vand.u32 2147483647, %v374
    %vm430 = vcmp.eq.f32.partialorder %v429, 8.507059e+37
    %v431 = vand.u32 %v374, 2147483648
    %v432 = vor.u32 1.1754944e-38, %v431
    %v433 = vsel %vm430, %v432, %v428
    %v434 = vmul.f32 %v355, %v433
    %v435 = vrcp.pop %v377
    %v436 = vmul.f32 %v377, %v435
    %v437 = vsub.f32 1.0, %v436
    %v438 = vmul.f32 %v435, %v437
    %v439 = vadd.f32 %v435, %v438
    %vm440 = vweird.f32 %v377
    %vm441 = vweird.f32 %v435
    %vm442 = vmor %vm440, %vm441
    %v443 = vsel %vm442, %v435, %v439
    %v444 = vand.u32 2147483647, %v377
    %vm445 = vcmp.eq.f32.partialorder %v444, 8.507059e+37
    %v446 = vand.u32 %v377, 2147483648
    %v447 = vor.u32 1.1754944e-38, %v446
    %v448 = vsel %vm445, %v447, %v443
    %v449 = vmul.f32 %v357, %v448
    %v450 = vrcp.pop %v380
    %v451 = vmul.f32 %v380, %v450
    %v452 = vsub.f32 1.0, %v451
    %v453 = vmul.f32 %v450, %v452
    %v454 = vadd.f32 %v450, %v453
    %vm455 = vweird.f32 %v380
    %vm456 = vweird.f32 %v450
    %vm457 = vmor %vm455, %vm456
    %v458 = vsel %vm457, %v450, %v454
    %v459 = vand.u32 2147483647, %v380
    %vm460 = vcmp.eq.f32.partialorder %v459, 8.507059e+37
    %v461 = vand.u32 %v380, 2147483648
    %v462 = vor.u32 1.1754944e-38, %v461
    %v463 = vsel %vm460, %v462, %v458
    %v464 = vmul.f32 %v359, %v463
    %v465 = vrcp.pop %v383
    %v466 = vmul.f32 %v383, %v465
    %v467 = vsub.f32 1.0, %v466
    %v468 = vmul.f32 %v465, %v467
    %v469 = vadd.f32 %v465, %v468
    %vm470 = vweird.f32 %v383
    %vm471 = vweird.f32 %v465
    %vm472 = vmor %vm470, %vm471
    %v473 = vsel %vm472, %v465, %v469
    %v474 = vand.u32 2147483647, %v383
    %vm475 = vcmp.eq.f32.partialorder %v474, 8.507059e+37
    %v476 = vand.u32 %v383, 2147483648
    %v477 = vor.u32 1.1754944e-38, %v476
    %v478 = vsel %vm475, %v477, %v473
    %v479 = vmul.f32 %v361, %v478
    %v480 = vrcp.pop %v386
    %v481 = vmul.f32 %v386, %v480
    %v482 = vsub.f32 1.0, %v481
    %v483 = vmul.f32 %v480, %v482
    %v484 = vadd.f32 %v480, %v483
    %vm485 = vweird.f32 %v386
    %vm486 = vweird.f32 %v480
    %vm487 = vmor %vm485, %vm486
    %v488 = vsel %vm487, %v480, %v484
    %v489 = vand.u32 2147483647, %v386
    %vm490 = vcmp.eq.f32.partialorder %v489, 8.507059e+37
    %v491 = vand.u32 %v386, 2147483648
    %v492 = vor.u32 1.1754944e-38, %v491
    %v493 = vsel %vm490, %v492, %v488
    %v494 = vmul.f32 %v363, %v493
    %v495 = vrcp.pop %v389
    %v496 = vmul.f32 %v389, %v495
    %v497 = vsub.f32 1.0, %v496
    %v498 = vmul.f32 %v495, %v497
    %v499 = vadd.f32 %v495, %v498
    %vm500 = vweird.f32 %v389
    %vm501 = vweird.f32 %v495
    %vm502 = vmor %vm500, %vm501
    %v503 = vsel %vm502, %v495, %v499
    %v504 = vand.u32 2147483647, %v389
    %vm505 = vcmp.eq.f32.partialorder %v504, 8.507059e+37
    %v506 = vand.u32 %v389, 2147483648
    %v507 = vor.u32 1.1754944e-38, %v506
    %v508 = vsel %vm505, %v507, %v503
    %v509 = vmul.f32 %v365, %v508
    %510 = vrot.lane.b32.xlu0 %v90, 64
    %v511 = vpop.permute.xlu0 %510
    %v514 = vsel %vm111, %v404, 0
    %516 = vmatpush.msra.mxu0 0.0
    %517 = vmatpush.msra.mxu0 0.0
    %518 = vmatpush.msra.mxu0 0.0
    %519 = vmatpush.msra.mxu0 0.0
    %520 = vmatpush.msra.mxu0 0.0
    %521 = vmatpush.msra.mxu0 0.0
    %522 = vmatpush.msra.mxu0 0.0
    %523 = vmatpush.msra.mxu0 0.0
    %524 = vmatpush.msra.mxu0 0.0
    %525 = vmatpush.msra.mxu0 0.0
    %526 = vmatpush.msra.mxu0 0.0
    %527 = vmatpush.msra.mxu0 0.0
    %528 = vmatpush.msra.mxu0 0.0
    %529 = vmatpush.msra.mxu0 0.0
    %530 = vmatpush.msra.mxu0 0.0
    %531 = vmatpush.msra.mxu0 %v511
    %532 = vmatmul.f32.gmra.mxu0 %v514
    %v533 = vpop.f32.mrf.mxu0
    %v534 = vadd.f32 0.0, %v533
    %535 = vdwg.mxu0
    %536 = vrot.lane.b32.xlu0 %v93, 64
    %v537 = vpop.permute.xlu0 %536
    %v540 = vsel %vm111, %v419, 0
    %542 = vmatpush.msra.mxu0 0.0
    %543 = vmatpush.msra.mxu0 0.0
    %544 = vmatpush.msra.mxu0 0.0
    %545 = vmatpush.msra.mxu0 0.0
    %546 = vmatpush.msra.mxu0 0.0
    %547 = vmatpush.msra.mxu0 0.0
    %548 = vmatpush.msra.mxu0 0.0
    %549 = vmatpush.msra.mxu0 0.0
    %550 = vmatpush.msra.mxu0 0.0
    %551 = vmatpush.msra.mxu0 0.0
    %552 = vmatpush.msra.mxu0 0.0
    %553 = vmatpush.msra.mxu0 0.0
    %554 = vmatpush.msra.mxu0 0.0
    %555 = vmatpush.msra.mxu0 0.0
    %556 = vmatpush.msra.mxu0 0.0
    %557 = vmatpush.msra.mxu0 %v537
    %558 = vmatmul.f32.gmra.mxu0 %v540
    %v559 = vpop.f32.mrf.mxu0
    %v560 = vadd.f32 0.0, %v559
    %561 = vdwg.mxu0
    %562 = vrot.lane.b32.xlu0 %v98, 64
    %v563 = vpop.permute.xlu0 %562
    %v566 = vsel %vm111, %v434, 0
    %568 = vmatpush.msra.mxu0 0.0
    %569 = vmatpush.msra.mxu0 0.0
    %570 = vmatpush.msra.mxu0 0.0
    %571 = vmatpush.msra.mxu0 0.0
    %572 = vmatpush.msra.mxu0 0.0
    %573 = vmatpush.msra.mxu0 0.0
    %574 = vmatpush.msra.mxu0 0.0
    %575 = vmatpush.msra.mxu0 0.0
    %576 = vmatpush.msra.mxu0 0.0
    %577 = vmatpush.msra.mxu0 0.0
    %578 = vmatpush.msra.mxu0 0.0
    %579 = vmatpush.msra.mxu0 0.0
    %580 = vmatpush.msra.mxu0 0.0
    %581 = vmatpush.msra.mxu0 0.0
    %582 = vmatpush.msra.mxu0 0.0
    %583 = vmatpush.msra.mxu0 %v563
    %584 = vmatmul.f32.gmra.mxu0 %v566
    %v585 = vpop.f32.mrf.mxu0
    %v586 = vadd.f32 0.0, %v585
    %587 = vdwg.mxu0
    %588 = vrot.lane.b32.xlu0 %v100, 64
    %v589 = vpop.permute.xlu0 %588
    %v592 = vsel %vm111, %v449, 0
    %594 = vmatpush.msra.mxu0 0.0
    %595 = vmatpush.msra.mxu0 0.0
    %596 = vmatpush.msra.mxu0 0.0
    %597 = vmatpush.msra.mxu0 0.0
    %598 = vmatpush.msra.mxu0 0.0
    %599 = vmatpush.msra.mxu0 0.0
    %600 = vmatpush.msra.mxu0 0.0
    %601 = vmatpush.msra.mxu0 0.0
    %602 = vmatpush.msra.mxu0 0.0
    %603 = vmatpush.msra.mxu0 0.0
    %604 = vmatpush.msra.mxu0 0.0
    %605 = vmatpush.msra.mxu0 0.0
    %606 = vmatpush.msra.mxu0 0.0
    %607 = vmatpush.msra.mxu0 0.0
    %608 = vmatpush.msra.mxu0 0.0
    %609 = vmatpush.msra.mxu0 %v589
    %610 = vmatmul.f32.gmra.mxu0 %v592
    %v611 = vpop.f32.mrf.mxu0
    %v612 = vadd.f32 0.0, %v611
    %613 = vdwg.mxu0
    %614 = vrot.lane.b32.xlu0 %v102, 64
    %v615 = vpop.permute.xlu0 %614
    %v618 = vsel %vm111, %v464, 0
    %620 = vmatpush.msra.mxu0 0.0
    %621 = vmatpush.msra.mxu0 0.0
    %622 = vmatpush.msra.mxu0 0.0
    %623 = vmatpush.msra.mxu0 0.0
    %624 = vmatpush.msra.mxu0 0.0
    %625 = vmatpush.msra.mxu0 0.0
    %626 = vmatpush.msra.mxu0 0.0
    %627 = vmatpush.msra.mxu0 0.0
    %628 = vmatpush.msra.mxu0 0.0
    %629 = vmatpush.msra.mxu0 0.0
    %630 = vmatpush.msra.mxu0 0.0
    %631 = vmatpush.msra.mxu0 0.0
    %632 = vmatpush.msra.mxu0 0.0
    %633 = vmatpush.msra.mxu0 0.0
    %634 = vmatpush.msra.mxu0 0.0
    %635 = vmatpush.msra.mxu0 %v615
    %636 = vmatmul.f32.gmra.mxu0 %v618
    %v637 = vpop.f32.mrf.mxu0
    %v638 = vadd.f32 0.0, %v637
    %639 = vdwg.mxu0
    %640 = vrot.lane.b32.xlu0 %v104, 64
    %v641 = vpop.permute.xlu0 %640
    %v644 = vsel %vm111, %v479, 0
    %646 = vmatpush.msra.mxu0 0.0
    %647 = vmatpush.msra.mxu0 0.0
    %648 = vmatpush.msra.mxu0 0.0
    %649 = vmatpush.msra.mxu0 0.0
    %650 = vmatpush.msra.mxu0 0.0
    %651 = vmatpush.msra.mxu0 0.0
    %652 = vmatpush.msra.mxu0 0.0
    %653 = vmatpush.msra.mxu0 0.0
    %654 = vmatpush.msra.mxu0 0.0
    %655 = vmatpush.msra.mxu0 0.0
    %656 = vmatpush.msra.mxu0 0.0
    %657 = vmatpush.msra.mxu0 0.0
    %658 = vmatpush.msra.mxu0 0.0
    %659 = vmatpush.msra.mxu0 0.0
    %660 = vmatpush.msra.mxu0 0.0
    %661 = vmatpush.msra.mxu0 %v641
    %662 = vmatmul.f32.gmra.mxu0 %v644
    %v663 = vpop.f32.mrf.mxu0
    %v664 = vadd.f32 0.0, %v663
    %665 = vdwg.mxu0
    %666 = vrot.lane.b32.xlu0 %v106, 64
    %v667 = vpop.permute.xlu0 %666
    %v670 = vsel %vm111, %v494, 0
    %672 = vmatpush.msra.mxu0 0.0
    %673 = vmatpush.msra.mxu0 0.0
    %674 = vmatpush.msra.mxu0 0.0
    %675 = vmatpush.msra.mxu0 0.0
    %676 = vmatpush.msra.mxu0 0.0
    %677 = vmatpush.msra.mxu0 0.0
    %678 = vmatpush.msra.mxu0 0.0
    %679 = vmatpush.msra.mxu0 0.0
    %680 = vmatpush.msra.mxu0 0.0
    %681 = vmatpush.msra.mxu0 0.0
    %682 = vmatpush.msra.mxu0 0.0
    %683 = vmatpush.msra.mxu0 0.0
    %684 = vmatpush.msra.mxu0 0.0
    %685 = vmatpush.msra.mxu0 0.0
    %686 = vmatpush.msra.mxu0 0.0
    %687 = vmatpush.msra.mxu0 %v667
    %688 = vmatmul.f32.gmra.mxu0 %v670
    %v689 = vpop.f32.mrf.mxu0
    %v690 = vadd.f32 0.0, %v689
    %691 = vdwg.mxu0
    %692 = vrot.lane.b32.xlu0 %v108, 64
    %v693 = vpop.permute.xlu0 %692
    %v696 = vsel %vm111, %v509, 0
    %698 = vmatpush.msra.mxu0 0.0
    %699 = vmatpush.msra.mxu0 0.0
    %700 = vmatpush.msra.mxu0 0.0
    %701 = vmatpush.msra.mxu0 0.0
    %702 = vmatpush.msra.mxu0 0.0
    %703 = vmatpush.msra.mxu0 0.0
    %704 = vmatpush.msra.mxu0 0.0
    %705 = vmatpush.msra.mxu0 0.0
    %706 = vmatpush.msra.mxu0 0.0
    %707 = vmatpush.msra.mxu0 0.0
    %708 = vmatpush.msra.mxu0 0.0
    %709 = vmatpush.msra.mxu0 0.0
    %710 = vmatpush.msra.mxu0 0.0
    %711 = vmatpush.msra.mxu0 0.0
    %712 = vmatpush.msra.mxu0 0.0
    %713 = vmatpush.msra.mxu0 %v693
    %714 = vmatmul.f32.gmra.mxu0 %v696
    %v715 = vpop.f32.mrf.mxu0
    %v716 = vadd.f32 0.0, %v715
    %717 = vdwg.mxu0
    %v719 = vsel %vm111, %v534, 0
    %v722 = vsel %vm111, %v560, 0
    %724 = vmatpush.msra.mxu0 0.0
    %725 = vmatpush.msra.mxu0 0.0
    %726 = vmatpush.msra.mxu0 0.0
    %727 = vmatpush.msra.mxu0 0.0
    %728 = vmatpush.msra.mxu0 0.0
    %729 = vmatpush.msra.mxu0 0.0
    %730 = vmatpush.msra.mxu0 0.0
    %731 = vmatpush.msra.mxu0 0.0
    %732 = vmatpush.msra.mxu0 0.0
    %733 = vmatpush.msra.mxu0 0.0
    %734 = vmatpush.msra.mxu0 0.0
    %735 = vmatpush.msra.mxu0 0.0
    %736 = vmatpush.msra.mxu0 0.0
    %737 = vmatpush.msra.mxu0 0.0
    %738 = vmatpush.msra.mxu0 0.0
    %739 = vmatpush.msra.mxu0 %v28
    %740 = vmatmul.f32.gmra.mxu0 %v719
    %v741 = vpop.f32.mrf.mxu0
    %v742 = vadd.f32 0.0, %v741
    %743 = vmatmul.f32.gmra.mxu0 %v722
    %v744 = vpop.f32.mrf.mxu0
    %v745 = vadd.f32 0.0, %v744
    %746 = vdwg.mxu0
    %v748 = vsel %vm111, %v586, 0
    %v751 = vsel %vm111, %v612, 0
    %753 = vmatpush.msra.mxu0 0.0
    %754 = vmatpush.msra.mxu0 0.0
    %755 = vmatpush.msra.mxu0 0.0
    %756 = vmatpush.msra.mxu0 0.0
    %757 = vmatpush.msra.mxu0 0.0
    %758 = vmatpush.msra.mxu0 0.0
    %759 = vmatpush.msra.mxu0 0.0
    %760 = vmatpush.msra.mxu0 0.0
    %761 = vmatpush.msra.mxu0 0.0
    %762 = vmatpush.msra.mxu0 0.0
    %763 = vmatpush.msra.mxu0 0.0
    %764 = vmatpush.msra.mxu0 0.0
    %765 = vmatpush.msra.mxu0 0.0
    %766 = vmatpush.msra.mxu0 0.0
    %767 = vmatpush.msra.mxu0 0.0
    %768 = vmatpush.msra.mxu0 %v29
    %769 = vmatmul.f32.gmra.mxu0 %v748
    %v770 = vpop.f32.mrf.mxu0
    %v771 = vadd.f32 0.0, %v770
    %772 = vmatmul.f32.gmra.mxu0 %v751
    %v773 = vpop.f32.mrf.mxu0
    %v774 = vadd.f32 0.0, %v773
    %775 = vdwg.mxu0
    %v777 = vsel %vm111, %v638, 0
    %v780 = vsel %vm111, %v664, 0
    %782 = vmatpush.msra.mxu0 0.0
    %783 = vmatpush.msra.mxu0 0.0
    %784 = vmatpush.msra.mxu0 0.0
    %785 = vmatpush.msra.mxu0 0.0
    %786 = vmatpush.msra.mxu0 0.0
    %787 = vmatpush.msra.mxu0 0.0
    %788 = vmatpush.msra.mxu0 0.0
    %789 = vmatpush.msra.mxu0 0.0
    %790 = vmatpush.msra.mxu0 0.0
    %791 = vmatpush.msra.mxu0 0.0
    %792 = vmatpush.msra.mxu0 0.0
    %793 = vmatpush.msra.mxu0 0.0
    %794 = vmatpush.msra.mxu0 0.0
    %795 = vmatpush.msra.mxu0 0.0
    %796 = vmatpush.msra.mxu0 0.0
    %797 = vmatpush.msra.mxu0 %v30
    %798 = vmatmul.f32.gmra.mxu0 %v777
    %v799 = vpop.f32.mrf.mxu0
    %v800 = vadd.f32 0.0, %v799
    %801 = vmatmul.f32.gmra.mxu0 %v780
    %v802 = vpop.f32.mrf.mxu0
    %v803 = vadd.f32 0.0, %v802
    %804 = vdwg.mxu0
    %v806 = vsel %vm111, %v690, 0
    %v809 = vsel %vm111, %v716, 0
    %811 = vmatpush.msra.mxu0 0.0
    %812 = vmatpush.msra.mxu0 0.0
    %813 = vmatpush.msra.mxu0 0.0
    %814 = vmatpush.msra.mxu0 0.0
    %815 = vmatpush.msra.mxu0 0.0
    %816 = vmatpush.msra.mxu0 0.0
    %817 = vmatpush.msra.mxu0 0.0
    %818 = vmatpush.msra.mxu0 0.0
    %819 = vmatpush.msra.mxu0 0.0
    %820 = vmatpush.msra.mxu0 0.0
    %821 = vmatpush.msra.mxu0 0.0
    %822 = vmatpush.msra.mxu0 0.0
    %823 = vmatpush.msra.mxu0 0.0
    %824 = vmatpush.msra.mxu0 0.0
    %825 = vmatpush.msra.mxu0 0.0
    %826 = vmatpush.msra.mxu0 %v31
    %827 = vmatmul.f32.gmra.mxu0 %v806
    %v828 = vpop.f32.mrf.mxu0
    %v829 = vadd.f32 0.0, %v828
    %830 = vmatmul.f32.gmra.mxu0 %v809
    %v831 = vpop.f32.mrf.mxu0
    %v832 = vadd.f32 0.0, %v831
    %833 = vdwg.mxu0
    %v834 = vsel %vm65, %v742, 0.0
    %v835 = vsel %vm65, %v771, 0.0
    %v836 = vadd.f32 %v834, %v835
    %v837 = vsel %vm65, %v800, 0.0
    %v838 = vadd.f32 %v836, %v837
    %v839 = vsel %vm65, %v829, 0.0
    %v840 = vadd.f32 %v838, %v839
    %v841 = vsel %vm65, %v745, 0.0
    %v842 = vsel %vm65, %v774, 0.0
    %v843 = vadd.f32 %v841, %v842
    %v844 = vsel %vm65, %v803, 0.0
    %v845 = vadd.f32 %v843, %v844
    %v846 = vsel %vm65, %v832, 0.0
    %v847 = vadd.f32 %v845, %v846
    %v848 = vperm.slane %v58, 0
    %v849 = vadd.f32 %v840, %v848
    %v850 = vadd.f32 %v847, %v848
    %v851 = vadd.f32 %v18, %v849
    %v852 = vadd.f32 %v19, %v850
    %v853 = vsel %vm65, %v851, 0.0
    %854 = vadd.xlane.f32.xlu0 %v853
    %v855 = vpop.xlane.xlu0 %854
    %v856 = vsel %vm65, %v852, 0.0
    %857 = vadd.xlane.f32.xlu0 %v856
    %v858 = vpop.xlane.xlu0 %857
    %v859 = vrcp.pop 32.0
    %v860 = vmul.f32 32.0, %v859
    %v861 = vsub.f32 1.0, %v860
    %v862 = vmul.f32 %v859, %v861
    %v863 = vadd.f32 %v859, %v862
    %vm864 = vweird.f32 %v859
    %v865 = vsel %vm864, %v859, %v863
    %v866 = vmul.f32 %v855, %v865
    %v867 = vmul.f32 %v858, %v865
    %v868 = vsub.f32 %v851, %v866
    %v869 = vsub.f32 %v852, %v867
    %v870 = vmul.f32 %v868, %v868
    %v871 = vmul.f32 %v869, %v869
    %v872 = vsel %vm65, %v870, 0.0
    %873 = vadd.xlane.f32.xlu0 %v872
    %v874 = vpop.xlane.xlu0 %873
    %v875 = vsel %vm65, %v871, 0.0
    %876 = vadd.xlane.f32.xlu0 %v875
    %v877 = vpop.xlane.xlu0 %876
    %v878 = vmul.f32 %v874, %v865
    %v879 = vmul.f32 %v877, %v865
    %v880 = vadd.f32 %v878, 1e-05
    %v881 = vadd.f32 %v879, 1e-05
    %v882 = vrsqrt.pop %v880
    %v883 = vmul.f32 %v882, %v880
    %v884 = vmul.f32 %v883, %v882
    %v885 = vmul.f32 0.5, %v884
    %v886 = vsub.f32 1.5, %v885
    %v887 = vmul.f32 %v882, %v886
    %vm888 = vweird.f32 %v880
    %vm889 = vweird.f32 %v882
    %vm890 = vmor %vm888, %vm889
    %v891 = vsel %vm890, %v882, %v887
    %v892 = vrsqrt.pop %v881
    %v893 = vmul.f32 %v892, %v881
    %v894 = vmul.f32 %v893, %v892
    %v895 = vmul.f32 0.5, %v894
    %v896 = vsub.f32 1.5, %v895
    %v897 = vmul.f32 %v892, %v896
    %vm898 = vweird.f32 %v881
    %vm899 = vweird.f32 %v892
    %vm900 = vmor %vm898, %vm899
    %v901 = vsel %vm900, %v892, %v897
    %v902 = vmul.f32 %v868, %v891
    %v903 = vmul.f32 %v869, %v901
    %v904 = vperm.slane %v56, 0
    %v905 = vmul.f32 %v902, %v904
    %v906 = vmul.f32 %v903, %v904
    %v907 = vperm.slane %v56, 1
    %v908 = vadd.f32 %v905, %v907
    %v909 = vadd.f32 %v906, %v907
    %v910 = vperm.slane %v59, 0
    %v912 = vsel %vm65, %v908, 0
    %v915 = vsel %vm65, %v909, 0
    %917 = vmatpush.msra.mxu0 0.0
    %918 = vmatpush.msra.mxu0 0.0
    %919 = vmatpush.msra.mxu0 0.0
    %920 = vmatpush.msra.mxu0 0.0
    %921 = vmatpush.msra.mxu0 0.0
    %922 = vmatpush.msra.mxu0 0.0
    %923 = vmatpush.msra.mxu0 0.0
    %924 = vmatpush.msra.mxu0 0.0
    %925 = vmatpush.msra.mxu0 0.0
    %926 = vmatpush.msra.mxu0 0.0
    %927 = vmatpush.msra.mxu0 0.0
    %928 = vmatpush.msra.mxu0 0.0
    %929 = vmatpush.msra.mxu0 %v35
    %930 = vmatpush.msra.mxu0 %v34
    %931 = vmatpush.msra.mxu0 %v33
    %932 = vmatpush.msra.mxu0 %v32
    %933 = vmatmul.f32.gmra.mxu0 %v912
    %v934 = vpop.f32.mrf.mxu0
    %v935 = vadd.f32 %v910, %v934
    %936 = vmatmul.f32.gmra.mxu0 %v915
    %v937 = vpop.f32.mrf.mxu0
    %v938 = vadd.f32 %v910, %v937
    %939 = vdwg.mxu0
    %v940 = vperm.slane %v60, 0
    %v942 = vsel %vm65, %v20, 0
    %v945 = vsel %vm65, %v21, 0
    %v948 = vsel %vm65, %v22, 0
    %v951 = vsel %vm65, %v23, 0
    %953 = vmatpush.msra.mxu0 0.0
    %954 = vmatpush.msra.mxu0 0.0
    %955 = vmatpush.msra.mxu0 0.0
    %956 = vmatpush.msra.mxu0 0.0
    %957 = vmatpush.msra.mxu0 0.0
    %958 = vmatpush.msra.mxu0 0.0
    %959 = vmatpush.msra.mxu0 0.0
    %960 = vmatpush.msra.mxu0 0.0
    %961 = vmatpush.msra.mxu0 0.0
    %962 = vmatpush.msra.mxu0 0.0
    %963 = vmatpush.msra.mxu0 0.0
    %964 = vmatpush.msra.mxu0 0.0
    %965 = vmatpush.msra.mxu0 %v39
    %966 = vmatpush.msra.mxu0 %v38
    %967 = vmatpush.msra.mxu0 %v37
    %968 = vmatpush.msra.mxu0 %v36
    %969 = vmatmul.f32.gmra.mxu0 %v942
    %v970 = vpop.f32.mrf.mxu0
    %v971 = vadd.f32 %v940, %v970
    %972 = vmatmul.f32.gmra.mxu0 %v945
    %v973 = vpop.f32.mrf.mxu0
    %v974 = vadd.f32 %v940, %v973
    %975 = vmatmul.f32.gmra.mxu0 %v948
    %v976 = vpop.f32.mrf.mxu0
    %v977 = vadd.f32 %v940, %v976
    %978 = vmatmul.f32.gmra.mxu0 %v951
    %v979 = vpop.f32.mrf.mxu0
    %v980 = vadd.f32 %v940, %v979
    %981 = vdwg.mxu0
    %984 = vrot.lane.b32.xlu0 %v935, 120
    %v985 = vpop.permute.xlu0 %984
    %986 = vrot.lane.b32.xlu0 %v938, 120
    %v987 = vpop.permute.xlu0 %986
    %988 = vrot.lane.b32.xlu0 %v935, 112
    %v989 = vpop.permute.xlu0 %988
    %990 = vrot.lane.b32.xlu0 %v938, 112
    %v991 = vpop.permute.xlu0 %990
    %992 = vrot.lane.b32.xlu0 %v935, 104
    %v993 = vpop.permute.xlu0 %992
    %994 = vrot.lane.b32.xlu0 %v938, 104
    %v995 = vpop.permute.xlu0 %994
    %1000 = vrot.lane.b32.xlu0 %v971, 120
    %v1001 = vpop.permute.xlu0 %1000
    %1002 = vrot.lane.b32.xlu0 %v974, 120
    %v1003 = vpop.permute.xlu0 %1002
    %1004 = vrot.lane.b32.xlu0 %v977, 120
    %v1005 = vpop.permute.xlu0 %1004
    %1006 = vrot.lane.b32.xlu0 %v980, 120
    %v1007 = vpop.permute.xlu0 %1006
    %1008 = vrot.lane.b32.xlu0 %v971, 112
    %v1009 = vpop.permute.xlu0 %1008
    %1010 = vrot.lane.b32.xlu0 %v974, 112
    %v1011 = vpop.permute.xlu0 %1010
    %1012 = vrot.lane.b32.xlu0 %v977, 112
    %v1013 = vpop.permute.xlu0 %1012
    %1014 = vrot.lane.b32.xlu0 %v980, 112
    %v1015 = vpop.permute.xlu0 %1014
    %1016 = vrot.lane.b32.xlu0 %v971, 104
    %v1017 = vpop.permute.xlu0 %1016
    %1018 = vrot.lane.b32.xlu0 %v974, 104
    %v1019 = vpop.permute.xlu0 %1018
    %1020 = vrot.lane.b32.xlu0 %v977, 104
    %v1021 = vpop.permute.xlu0 %1020
    %1022 = vrot.lane.b32.xlu0 %v980, 104
    %v1023 = vpop.permute.xlu0 %1022
    %v1024 = vsel %vm111, %v935, 0
    %v1026 = vsel %vm111, %v971, 0
    %v1028 = vsel %vm111, %v974, 0
    %1030 = vmatpush.xpose.msra.mxu0 0.0
    %1031 = vmatpush.xpose.msra.mxu0 0.0
    %1032 = vmatpush.xpose.msra.mxu0 0.0
    %1033 = vmatpush.xpose.msra.mxu0 0.0
    %1034 = vmatpush.xpose.msra.mxu0 0.0
    %1035 = vmatpush.xpose.msra.mxu0 0.0
    %1036 = vmatpush.xpose.msra.mxu0 0.0
    %1037 = vmatpush.xpose.msra.mxu0 0.0
    %1038 = vmatpush.xpose.msra.mxu0 0.0
    %1039 = vmatpush.xpose.msra.mxu0 0.0
    %1040 = vmatpush.xpose.msra.mxu0 0.0
    %1041 = vmatpush.xpose.msra.mxu0 0.0
    %1042 = vmatpush.xpose.msra.mxu0 0.0
    %1043 = vmatpush.xpose.msra.mxu0 0.0
    %1044 = vmatpush.xpose.msra.mxu0 %v1028
    %1045 = vmatpush.xpose.msra.mxu0 %v1026
    %1046 = vmatmul.f32.gmra.mxu0 %v1024
    %v1047 = vpop.f32.mrf.mxu0
    %v1048 = vadd.f32 0.0, %v1047
    %1049 = vdwg.mxu0
    %v1050 = vsel %vm111, %v938, 0
    %v1052 = vsel %vm111, %v977, 0
    %v1054 = vsel %vm111, %v980, 0
    %1056 = vmatpush.xpose.msra.mxu0 0.0
    %1057 = vmatpush.xpose.msra.mxu0 0.0
    %1058 = vmatpush.xpose.msra.mxu0 0.0
    %1059 = vmatpush.xpose.msra.mxu0 0.0
    %1060 = vmatpush.xpose.msra.mxu0 0.0
    %1061 = vmatpush.xpose.msra.mxu0 0.0
    %1062 = vmatpush.xpose.msra.mxu0 0.0
    %1063 = vmatpush.xpose.msra.mxu0 0.0
    %1064 = vmatpush.xpose.msra.mxu0 0.0
    %1065 = vmatpush.xpose.msra.mxu0 0.0
    %1066 = vmatpush.xpose.msra.mxu0 0.0
    %1067 = vmatpush.xpose.msra.mxu0 0.0
    %1068 = vmatpush.xpose.msra.mxu0 0.0
    %1069 = vmatpush.xpose.msra.mxu0 0.0
    %1070 = vmatpush.xpose.msra.mxu0 %v1054
    %1071 = vmatpush.xpose.msra.mxu0 %v1052
    %1072 = vmatmul.f32.gmra.mxu0 %v1050
    %v1073 = vpop.f32.mrf.mxu0
    %v1074 = vadd.f32 0.0, %v1073
    %1075 = vdwg.mxu0
    %v1076 = vsel %vm111, %v985, 0
    %v1078 = vsel %vm111, %v1001, 0
    %v1080 = vsel %vm111, %v1003, 0
    %1082 = vmatpush.xpose.msra.mxu0 0.0
    %1083 = vmatpush.xpose.msra.mxu0 0.0
    %1084 = vmatpush.xpose.msra.mxu0 0.0
    %1085 = vmatpush.xpose.msra.mxu0 0.0
    %1086 = vmatpush.xpose.msra.mxu0 0.0
    %1087 = vmatpush.xpose.msra.mxu0 0.0
    %1088 = vmatpush.xpose.msra.mxu0 0.0
    %1089 = vmatpush.xpose.msra.mxu0 0.0
    %1090 = vmatpush.xpose.msra.mxu0 0.0
    %1091 = vmatpush.xpose.msra.mxu0 0.0
    %1092 = vmatpush.xpose.msra.mxu0 0.0
    %1093 = vmatpush.xpose.msra.mxu0 0.0
    %1094 = vmatpush.xpose.msra.mxu0 0.0
    %1095 = vmatpush.xpose.msra.mxu0 0.0
    %1096 = vmatpush.xpose.msra.mxu0 %v1080
    %1097 = vmatpush.xpose.msra.mxu0 %v1078
    %1098 = vmatmul.f32.gmra.mxu0 %v1076
    %v1099 = vpop.f32.mrf.mxu0
    %v1100 = vadd.f32 0.0, %v1099
    %1101 = vdwg.mxu0
    %v1102 = vsel %vm111, %v987, 0
    %v1104 = vsel %vm111, %v1005, 0
    %v1106 = vsel %vm111, %v1007, 0
    %1108 = vmatpush.xpose.msra.mxu0 0.0
    %1109 = vmatpush.xpose.msra.mxu0 0.0
    %1110 = vmatpush.xpose.msra.mxu0 0.0
    %1111 = vmatpush.xpose.msra.mxu0 0.0
    %1112 = vmatpush.xpose.msra.mxu0 0.0
    %1113 = vmatpush.xpose.msra.mxu0 0.0
    %1114 = vmatpush.xpose.msra.mxu0 0.0
    %1115 = vmatpush.xpose.msra.mxu0 0.0
    %1116 = vmatpush.xpose.msra.mxu0 0.0
    %1117 = vmatpush.xpose.msra.mxu0 0.0
    %1118 = vmatpush.xpose.msra.mxu0 0.0
    %1119 = vmatpush.xpose.msra.mxu0 0.0
    %1120 = vmatpush.xpose.msra.mxu0 0.0
    %1121 = vmatpush.xpose.msra.mxu0 0.0
    %1122 = vmatpush.xpose.msra.mxu0 %v1106
    %1123 = vmatpush.xpose.msra.mxu0 %v1104
    %1124 = vmatmul.f32.gmra.mxu0 %v1102
    %v1125 = vpop.f32.mrf.mxu0
    %v1126 = vadd.f32 0.0, %v1125
    %1127 = vdwg.mxu0
    %v1128 = vsel %vm111, %v989, 0
    %v1130 = vsel %vm111, %v1009, 0
    %v1132 = vsel %vm111, %v1011, 0
    %1134 = vmatpush.xpose.msra.mxu0 0.0
    %1135 = vmatpush.xpose.msra.mxu0 0.0
    %1136 = vmatpush.xpose.msra.mxu0 0.0
    %1137 = vmatpush.xpose.msra.mxu0 0.0
    %1138 = vmatpush.xpose.msra.mxu0 0.0
    %1139 = vmatpush.xpose.msra.mxu0 0.0
    %1140 = vmatpush.xpose.msra.mxu0 0.0
    %1141 = vmatpush.xpose.msra.mxu0 0.0
    %1142 = vmatpush.xpose.msra.mxu0 0.0
    %1143 = vmatpush.xpose.msra.mxu0 0.0
    %1144 = vmatpush.xpose.msra.mxu0 0.0
    %1145 = vmatpush.xpose.msra.mxu0 0.0
    %1146 = vmatpush.xpose.msra.mxu0 0.0
    %1147 = vmatpush.xpose.msra.mxu0 0.0
    %1148 = vmatpush.xpose.msra.mxu0 %v1132
    %1149 = vmatpush.xpose.msra.mxu0 %v1130
    %1150 = vmatmul.f32.gmra.mxu0 %v1128
    %v1151 = vpop.f32.mrf.mxu0
    %v1152 = vadd.f32 0.0, %v1151
    %1153 = vdwg.mxu0
    %v1154 = vsel %vm111, %v991, 0
    %v1156 = vsel %vm111, %v1013, 0
    %v1158 = vsel %vm111, %v1015, 0
    %1160 = vmatpush.xpose.msra.mxu0 0.0
    %1161 = vmatpush.xpose.msra.mxu0 0.0
    %1162 = vmatpush.xpose.msra.mxu0 0.0
    %1163 = vmatpush.xpose.msra.mxu0 0.0
    %1164 = vmatpush.xpose.msra.mxu0 0.0
    %1165 = vmatpush.xpose.msra.mxu0 0.0
    %1166 = vmatpush.xpose.msra.mxu0 0.0
    %1167 = vmatpush.xpose.msra.mxu0 0.0
    %1168 = vmatpush.xpose.msra.mxu0 0.0
    %1169 = vmatpush.xpose.msra.mxu0 0.0
    %1170 = vmatpush.xpose.msra.mxu0 0.0
    %1171 = vmatpush.xpose.msra.mxu0 0.0
    %1172 = vmatpush.xpose.msra.mxu0 0.0
    %1173 = vmatpush.xpose.msra.mxu0 0.0
    %1174 = vmatpush.xpose.msra.mxu0 %v1158
    %1175 = vmatpush.xpose.msra.mxu0 %v1156
    %1176 = vmatmul.f32.gmra.mxu0 %v1154
    %v1177 = vpop.f32.mrf.mxu0
    %v1178 = vadd.f32 0.0, %v1177
    %1179 = vdwg.mxu0
    %v1180 = vsel %vm111, %v993, 0
    %v1182 = vsel %vm111, %v1017, 0
    %v1184 = vsel %vm111, %v1019, 0
    %1186 = vmatpush.xpose.msra.mxu0 0.0
    %1187 = vmatpush.xpose.msra.mxu0 0.0
    %1188 = vmatpush.xpose.msra.mxu0 0.0
    %1189 = vmatpush.xpose.msra.mxu0 0.0
    %1190 = vmatpush.xpose.msra.mxu0 0.0
    %1191 = vmatpush.xpose.msra.mxu0 0.0
    %1192 = vmatpush.xpose.msra.mxu0 0.0
    %1193 = vmatpush.xpose.msra.mxu0 0.0
    %1194 = vmatpush.xpose.msra.mxu0 0.0
    %1195 = vmatpush.xpose.msra.mxu0 0.0
    %1196 = vmatpush.xpose.msra.mxu0 0.0
    %1197 = vmatpush.xpose.msra.mxu0 0.0
    %1198 = vmatpush.xpose.msra.mxu0 0.0
    %1199 = vmatpush.xpose.msra.mxu0 0.0
    %1200 = vmatpush.xpose.msra.mxu0 %v1184
    %1201 = vmatpush.xpose.msra.mxu0 %v1182
    %1202 = vmatmul.f32.gmra.mxu0 %v1180
    %v1203 = vpop.f32.mrf.mxu0
    %v1204 = vadd.f32 0.0, %v1203
    %1205 = vdwg.mxu0
    %v1206 = vsel %vm111, %v995, 0
    %v1208 = vsel %vm111, %v1021, 0
    %v1210 = vsel %vm111, %v1023, 0
    %1212 = vmatpush.xpose.msra.mxu0 0.0
    %1213 = vmatpush.xpose.msra.mxu0 0.0
    %1214 = vmatpush.xpose.msra.mxu0 0.0
    %1215 = vmatpush.xpose.msra.mxu0 0.0
    %1216 = vmatpush.xpose.msra.mxu0 0.0
    %1217 = vmatpush.xpose.msra.mxu0 0.0
    %1218 = vmatpush.xpose.msra.mxu0 0.0
    %1219 = vmatpush.xpose.msra.mxu0 0.0
    %1220 = vmatpush.xpose.msra.mxu0 0.0
    %1221 = vmatpush.xpose.msra.mxu0 0.0
    %1222 = vmatpush.xpose.msra.mxu0 0.0
    %1223 = vmatpush.xpose.msra.mxu0 0.0
    %1224 = vmatpush.xpose.msra.mxu0 0.0
    %1225 = vmatpush.xpose.msra.mxu0 0.0
    %1226 = vmatpush.xpose.msra.mxu0 %v1210
    %1227 = vmatpush.xpose.msra.mxu0 %v1208
    %1228 = vmatmul.f32.gmra.mxu0 %v1206
    %v1229 = vpop.f32.mrf.mxu0
    %v1230 = vadd.f32 0.0, %v1229
    %1231 = vdwg.mxu0
    %vm1232 = vcmask 130048
    %v1233 = vsel %vm1232, %v1048, -inf
    %1234 = vmax.xlane.f32.xlu0 %v1233
    %v1235 = vpop.xlane.xlu0 %1234
    %v1236 = vsel %vm1232, %v1074, -inf
    %1237 = vmax.xlane.f32.xlu0 %v1236
    %v1238 = vpop.xlane.xlu0 %1237
    %v1239 = vsel %vm1232, %v1100, -inf
    %1240 = vmax.xlane.f32.xlu0 %v1239
    %v1241 = vpop.xlane.xlu0 %1240
    %v1242 = vsel %vm1232, %v1126, -inf
    %1243 = vmax.xlane.f32.xlu0 %v1242
    %v1244 = vpop.xlane.xlu0 %1243
    %v1245 = vsel %vm1232, %v1152, -inf
    %1246 = vmax.xlane.f32.xlu0 %v1245
    %v1247 = vpop.xlane.xlu0 %1246
    %v1248 = vsel %vm1232, %v1178, -inf
    %1249 = vmax.xlane.f32.xlu0 %v1248
    %v1250 = vpop.xlane.xlu0 %1249
    %v1251 = vsel %vm1232, %v1204, -inf
    %1252 = vmax.xlane.f32.xlu0 %v1251
    %v1253 = vpop.xlane.xlu0 %1252
    %v1254 = vsel %vm1232, %v1230, -inf
    %1255 = vmax.xlane.f32.xlu0 %v1254
    %v1256 = vpop.xlane.xlu0 %1255
    %v1257 = vsub.f32 %v1048, %v1235
    %v1258 = vsub.f32 %v1074, %v1238
    %v1259 = vsub.f32 %v1100, %v1241
    %v1260 = vsub.f32 %v1126, %v1244
    %v1261 = vsub.f32 %v1152, %v1247
    %v1262 = vsub.f32 %v1178, %v1250
    %v1263 = vsub.f32 %v1204, %v1253
    %v1264 = vsub.f32 %v1230, %v1256
    %v1265 = vmul.f32 %v1257, 1.442695
    %v1266 = vpow.pop %v1265
    %v1267 = vmul.f32 %v1258, 1.442695
    %v1268 = vpow.pop %v1267
    %v1269 = vmul.f32 %v1259, 1.442695
    %v1270 = vpow.pop %v1269
    %v1271 = vmul.f32 %v1260, 1.442695
    %v1272 = vpow.pop %v1271
    %v1273 = vmul.f32 %v1261, 1.442695
    %v1274 = vpow.pop %v1273
    %v1275 = vmul.f32 %v1262, 1.442695
    %v1276 = vpow.pop %v1275
    %v1277 = vmul.f32 %v1263, 1.442695
    %v1278 = vpow.pop %v1277
    %v1279 = vmul.f32 %v1264, 1.442695
    %v1280 = vpow.pop %v1279
    %v1281 = vsel %vm1232, %v1266, 0.0
    %1282 = vadd.xlane.f32.xlu0 %v1281
    %v1283 = vpop.xlane.xlu0 %1282
    %v1284 = vsel %vm1232, %v1268, 0.0
    %1285 = vadd.xlane.f32.xlu0 %v1284
    %v1286 = vpop.xlane.xlu0 %1285
    %v1287 = vsel %vm1232, %v1270, 0.0
    %1288 = vadd.xlane.f32.xlu0 %v1287
    %v1289 = vpop.xlane.xlu0 %1288
    %v1290 = vsel %vm1232, %v1272, 0.0
    %1291 = vadd.xlane.f32.xlu0 %v1290
    %v1292 = vpop.xlane.xlu0 %1291
    %v1293 = vsel %vm1232, %v1274, 0.0
    %1294 = vadd.xlane.f32.xlu0 %v1293
    %v1295 = vpop.xlane.xlu0 %1294
    %v1296 = vsel %vm1232, %v1276, 0.0
    %1297 = vadd.xlane.f32.xlu0 %v1296
    %v1298 = vpop.xlane.xlu0 %1297
    %v1299 = vsel %vm1232, %v1278, 0.0
    %1300 = vadd.xlane.f32.xlu0 %v1299
    %v1301 = vpop.xlane.xlu0 %1300
    %v1302 = vsel %vm1232, %v1280, 0.0
    %1303 = vadd.xlane.f32.xlu0 %v1302
    %v1304 = vpop.xlane.xlu0 %1303
    %v1305 = vrcp.pop %v1283
    %v1306 = vmul.f32 %v1283, %v1305
    %v1307 = vsub.f32 1.0, %v1306
    %v1308 = vmul.f32 %v1305, %v1307
    %v1309 = vadd.f32 %v1305, %v1308
    %vm1310 = vweird.f32 %v1283
    %vm1311 = vweird.f32 %v1305
    %vm1312 = vmor %vm1310, %vm1311
    %v1313 = vsel %vm1312, %v1305, %v1309
    %v1314 = vand.u32 2147483647, %v1283
    %vm1315 = vcmp.eq.f32.partialorder %v1314, 8.507059e+37
    %v1316 = vand.u32 %v1283, 2147483648
    %v1317 = vor.u32 1.1754944e-38, %v1316
    %v1318 = vsel %vm1315, %v1317, %v1313
    %v1319 = vmul.f32 %v1266, %v1318
    %v1320 = vrcp.pop %v1286
    %v1321 = vmul.f32 %v1286, %v1320
    %v1322 = vsub.f32 1.0, %v1321
    %v1323 = vmul.f32 %v1320, %v1322
    %v1324 = vadd.f32 %v1320, %v1323
    %vm1325 = vweird.f32 %v1286
    %vm1326 = vweird.f32 %v1320
    %vm1327 = vmor %vm1325, %vm1326
    %v1328 = vsel %vm1327, %v1320, %v1324
    %v1329 = vand.u32 2147483647, %v1286
    %vm1330 = vcmp.eq.f32.partialorder %v1329, 8.507059e+37
    %v1331 = vand.u32 %v1286, 2147483648
    %v1332 = vor.u32 1.1754944e-38, %v1331
    %v1333 = vsel %vm1330, %v1332, %v1328
    %v1334 = vmul.f32 %v1268, %v1333
    %v1335 = vrcp.pop %v1289
    %v1336 = vmul.f32 %v1289, %v1335
    %v1337 = vsub.f32 1.0, %v1336
    %v1338 = vmul.f32 %v1335, %v1337
    %v1339 = vadd.f32 %v1335, %v1338
    %vm1340 = vweird.f32 %v1289
    %vm1341 = vweird.f32 %v1335
    %vm1342 = vmor %vm1340, %vm1341
    %v1343 = vsel %vm1342, %v1335, %v1339
    %v1344 = vand.u32 2147483647, %v1289
    %vm1345 = vcmp.eq.f32.partialorder %v1344, 8.507059e+37
    %v1346 = vand.u32 %v1289, 2147483648
    %v1347 = vor.u32 1.1754944e-38, %v1346
    %v1348 = vsel %vm1345, %v1347, %v1343
    %v1349 = vmul.f32 %v1270, %v1348
    %v1350 = vrcp.pop %v1292
    %v1351 = vmul.f32 %v1292, %v1350
    %v1352 = vsub.f32 1.0, %v1351
    %v1353 = vmul.f32 %v1350, %v1352
    %v1354 = vadd.f32 %v1350, %v1353
    %vm1355 = vweird.f32 %v1292
    %vm1356 = vweird.f32 %v1350
    %vm1357 = vmor %vm1355, %vm1356
    %v1358 = vsel %vm1357, %v1350, %v1354
    %v1359 = vand.u32 2147483647, %v1292
    %vm1360 = vcmp.eq.f32.partialorder %v1359, 8.507059e+37
    %v1361 = vand.u32 %v1292, 2147483648
    %v1362 = vor.u32 1.1754944e-38, %v1361
    %v1363 = vsel %vm1360, %v1362, %v1358
    %v1364 = vmul.f32 %v1272, %v1363
    %v1365 = vrcp.pop %v1295
    %v1366 = vmul.f32 %v1295, %v1365
    %v1367 = vsub.f32 1.0, %v1366
    %v1368 = vmul.f32 %v1365, %v1367
    %v1369 = vadd.f32 %v1365, %v1368
    %vm1370 = vweird.f32 %v1295
    %vm1371 = vweird.f32 %v1365
    %vm1372 = vmor %vm1370, %vm1371
    %v1373 = vsel %vm1372, %v1365, %v1369
    %v1374 = vand.u32 2147483647, %v1295
    %vm1375 = vcmp.eq.f32.partialorder %v1374, 8.507059e+37
    %v1376 = vand.u32 %v1295, 2147483648
    %v1377 = vor.u32 1.1754944e-38, %v1376
    %v1378 = vsel %vm1375, %v1377, %v1373
    %v1379 = vmul.f32 %v1274, %v1378
    %v1380 = vrcp.pop %v1298
    %v1381 = vmul.f32 %v1298, %v1380
    %v1382 = vsub.f32 1.0, %v1381
    %v1383 = vmul.f32 %v1380, %v1382
    %v1384 = vadd.f32 %v1380, %v1383
    %vm1385 = vweird.f32 %v1298
    %vm1386 = vweird.f32 %v1380
    %vm1387 = vmor %vm1385, %vm1386
    %v1388 = vsel %vm1387, %v1380, %v1384
    %v1389 = vand.u32 2147483647, %v1298
    %vm1390 = vcmp.eq.f32.partialorder %v1389, 8.507059e+37
    %v1391 = vand.u32 %v1298, 2147483648
    %v1392 = vor.u32 1.1754944e-38, %v1391
    %v1393 = vsel %vm1390, %v1392, %v1388
    %v1394 = vmul.f32 %v1276, %v1393
    %v1395 = vrcp.pop %v1301
    %v1396 = vmul.f32 %v1301, %v1395
    %v1397 = vsub.f32 1.0, %v1396
    %v1398 = vmul.f32 %v1395, %v1397
    %v1399 = vadd.f32 %v1395, %v1398
    %vm1400 = vweird.f32 %v1301
    %vm1401 = vweird.f32 %v1395
    %vm1402 = vmor %vm1400, %vm1401
    %v1403 = vsel %vm1402, %v1395, %v1399
    %v1404 = vand.u32 2147483647, %v1301
    %vm1405 = vcmp.eq.f32.partialorder %v1404, 8.507059e+37
    %v1406 = vand.u32 %v1301, 2147483648
    %v1407 = vor.u32 1.1754944e-38, %v1406
    %v1408 = vsel %vm1405, %v1407, %v1403
    %v1409 = vmul.f32 %v1278, %v1408
    %v1410 = vrcp.pop %v1304
    %v1411 = vmul.f32 %v1304, %v1410
    %v1412 = vsub.f32 1.0, %v1411
    %v1413 = vmul.f32 %v1410, %v1412
    %v1414 = vadd.f32 %v1410, %v1413
    %vm1415 = vweird.f32 %v1304
    %vm1416 = vweird.f32 %v1410
    %vm1417 = vmor %vm1415, %vm1416
    %v1418 = vsel %vm1417, %v1410, %v1414
    %v1419 = vand.u32 2147483647, %v1304
    %vm1420 = vcmp.eq.f32.partialorder %v1419, 8.507059e+37
    %v1421 = vand.u32 %v1304, 2147483648
    %v1422 = vor.u32 1.1754944e-38, %v1421
    %v1423 = vsel %vm1420, %v1422, %v1418
    %v1424 = vmul.f32 %v1280, %v1423
    %1425 = vrot.lane.b32.xlu0 %v971, 96
    %v1426 = vpop.permute.xlu0 %1425
    %1427 = vrot.lane.b32.xlu0 %v974, 96
    %v1428 = vpop.permute.xlu0 %1427
    %v1432 = vsel %vm1232, %v1319, 0
    %1434 = vmatpush.msra.mxu0 0.0
    %1435 = vmatpush.msra.mxu0 0.0
    %1436 = vmatpush.msra.mxu0 0.0
    %1437 = vmatpush.msra.mxu0 0.0
    %1438 = vmatpush.msra.mxu0 0.0
    %1439 = vmatpush.msra.mxu0 0.0
    %1440 = vmatpush.msra.mxu0 0.0
    %1441 = vmatpush.msra.mxu0 0.0
    %1442 = vmatpush.msra.mxu0 0.0
    %1443 = vmatpush.msra.mxu0 0.0
    %1444 = vmatpush.msra.mxu0 0.0
    %1445 = vmatpush.msra.mxu0 0.0
    %1446 = vmatpush.msra.mxu0 0.0
    %1447 = vmatpush.msra.mxu0 0.0
    %1448 = vmatpush.msra.mxu0 %v1428
    %1449 = vmatpush.msra.mxu0 %v1426
    %1450 = vmatmul.f32.gmra.mxu0 %v1432
    %v1451 = vpop.f32.mrf.mxu0
    %v1452 = vadd.f32 0.0, %v1451
    %1453 = vdwg.mxu0
    %1454 = vrot.lane.b32.xlu0 %v977, 96
    %v1455 = vpop.permute.xlu0 %1454
    %1456 = vrot.lane.b32.xlu0 %v980, 96
    %v1457 = vpop.permute.xlu0 %1456
    %v1461 = vsel %vm1232, %v1334, 0
    %1463 = vmatpush.msra.mxu0 0.0
    %1464 = vmatpush.msra.mxu0 0.0
    %1465 = vmatpush.msra.mxu0 0.0
    %1466 = vmatpush.msra.mxu0 0.0
    %1467 = vmatpush.msra.mxu0 0.0
    %1468 = vmatpush.msra.mxu0 0.0
    %1469 = vmatpush.msra.mxu0 0.0
    %1470 = vmatpush.msra.mxu0 0.0
    %1471 = vmatpush.msra.mxu0 0.0
    %1472 = vmatpush.msra.mxu0 0.0
    %1473 = vmatpush.msra.mxu0 0.0
    %1474 = vmatpush.msra.mxu0 0.0
    %1475 = vmatpush.msra.mxu0 0.0
    %1476 = vmatpush.msra.mxu0 0.0
    %1477 = vmatpush.msra.mxu0 %v1457
    %1478 = vmatpush.msra.mxu0 %v1455
    %1479 = vmatmul.f32.gmra.mxu0 %v1461
    %v1480 = vpop.f32.mrf.mxu0
    %v1481 = vadd.f32 0.0, %v1480
    %1482 = vdwg.mxu0
    %1483 = vrot.lane.b32.xlu0 %v1001, 96
    %v1484 = vpop.permute.xlu0 %1483
    %1485 = vrot.lane.b32.xlu0 %v1003, 96
    %v1486 = vpop.permute.xlu0 %1485
    %v1490 = vsel %vm1232, %v1349, 0
    %1492 = vmatpush.msra.mxu0 0.0
    %1493 = vmatpush.msra.mxu0 0.0
    %1494 = vmatpush.msra.mxu0 0.0
    %1495 = vmatpush.msra.mxu0 0.0
    %1496 = vmatpush.msra.mxu0 0.0
    %1497 = vmatpush.msra.mxu0 0.0
    %1498 = vmatpush.msra.mxu0 0.0
    %1499 = vmatpush.msra.mxu0 0.0
    %1500 = vmatpush.msra.mxu0 0.0
    %1501 = vmatpush.msra.mxu0 0.0
    %1502 = vmatpush.msra.mxu0 0.0
    %1503 = vmatpush.msra.mxu0 0.0
    %1504 = vmatpush.msra.mxu0 0.0
    %1505 = vmatpush.msra.mxu0 0.0
    %1506 = vmatpush.msra.mxu0 %v1486
    %1507 = vmatpush.msra.mxu0 %v1484
    %1508 = vmatmul.f32.gmra.mxu0 %v1490
    %v1509 = vpop.f32.mrf.mxu0
    %v1510 = vadd.f32 0.0, %v1509
    %1511 = vdwg.mxu0
    %1512 = vrot.lane.b32.xlu0 %v1005, 96
    %v1513 = vpop.permute.xlu0 %1512
    %1514 = vrot.lane.b32.xlu0 %v1007, 96
    %v1515 = vpop.permute.xlu0 %1514
    %v1519 = vsel %vm1232, %v1364, 0
    %1521 = vmatpush.msra.mxu0 0.0
    %1522 = vmatpush.msra.mxu0 0.0
    %1523 = vmatpush.msra.mxu0 0.0
    %1524 = vmatpush.msra.mxu0 0.0
    %1525 = vmatpush.msra.mxu0 0.0
    %1526 = vmatpush.msra.mxu0 0.0
    %1527 = vmatpush.msra.mxu0 0.0
    %1528 = vmatpush.msra.mxu0 0.0
    %1529 = vmatpush.msra.mxu0 0.0
    %1530 = vmatpush.msra.mxu0 0.0
    %1531 = vmatpush.msra.mxu0 0.0
    %1532 = vmatpush.msra.mxu0 0.0
    %1533 = vmatpush.msra.mxu0 0.0
    %1534 = vmatpush.msra.mxu0 0.0
    %1535 = vmatpush.msra.mxu0 %v1515
    %1536 = vmatpush.msra.mxu0 %v1513
    %1537 = vmatmul.f32.gmra.mxu0 %v1519
    %v1538 = vpop.f32.mrf.mxu0
    %v1539 = vadd.f32 0.0, %v1538
    %1540 = vdwg.mxu0
    %1541 = vrot.lane.b32.xlu0 %v1009, 96
    %v1542 = vpop.permute.xlu0 %1541
    %1543 = vrot.lane.b32.xlu0 %v1011, 96
    %v1544 = vpop.permute.xlu0 %1543
    %v1548 = vsel %vm1232, %v1379, 0
    %1550 = vmatpush.msra.mxu0 0.0
    %1551 = vmatpush.msra.mxu0 0.0
    %1552 = vmatpush.msra.mxu0 0.0
    %1553 = vmatpush.msra.mxu0 0.0
    %1554 = vmatpush.msra.mxu0 0.0
    %1555 = vmatpush.msra.mxu0 0.0
    %1556 = vmatpush.msra.mxu0 0.0
    %1557 = vmatpush.msra.mxu0 0.0
    %1558 = vmatpush.msra.mxu0 0.0
    %1559 = vmatpush.msra.mxu0 0.0
    %1560 = vmatpush.msra.mxu0 0.0
    %1561 = vmatpush.msra.mxu0 0.0
    %1562 = vmatpush.msra.mxu0 0.0
    %1563 = vmatpush.msra.mxu0 0.0
    %1564 = vmatpush.msra.mxu0 %v1544
    %1565 = vmatpush.msra.mxu0 %v1542
    %1566 = vmatmul.f32.gmra.mxu0 %v1548
    %v1567 = vpop.f32.mrf.mxu0
    %v1568 = vadd.f32 0.0, %v1567
    %1569 = vdwg.mxu0
    %1570 = vrot.lane.b32.xlu0 %v1013, 96
    %v1571 = vpop.permute.xlu0 %1570
    %1572 = vrot.lane.b32.xlu0 %v1015, 96
    %v1573 = vpop.permute.xlu0 %1572
    %v1577 = vsel %vm1232, %v1394, 0
    %1579 = vmatpush.msra.mxu0 0.0
    %1580 = vmatpush.msra.mxu0 0.0
    %1581 = vmatpush.msra.mxu0 0.0
    %1582 = vmatpush.msra.mxu0 0.0
    %1583 = vmatpush.msra.mxu0 0.0
    %1584 = vmatpush.msra.mxu0 0.0
    %1585 = vmatpush.msra.mxu0 0.0
    %1586 = vmatpush.msra.mxu0 0.0
    %1587 = vmatpush.msra.mxu0 0.0
    %1588 = vmatpush.msra.mxu0 0.0
    %1589 = vmatpush.msra.mxu0 0.0
    %1590 = vmatpush.msra.mxu0 0.0
    %1591 = vmatpush.msra.mxu0 0.0
    %1592 = vmatpush.msra.mxu0 0.0
    %1593 = vmatpush.msra.mxu0 %v1573
    %1594 = vmatpush.msra.mxu0 %v1571
    %1595 = vmatmul.f32.gmra.mxu0 %v1577
    %v1596 = vpop.f32.mrf.mxu0
    %v1597 = vadd.f32 0.0, %v1596
    %1598 = vdwg.mxu0
    %1599 = vrot.lane.b32.xlu0 %v1017, 96
    %v1600 = vpop.permute.xlu0 %1599
    %1601 = vrot.lane.b32.xlu0 %v1019, 96
    %v1602 = vpop.permute.xlu0 %1601
    %v1606 = vsel %vm1232, %v1409, 0
    %1608 = vmatpush.msra.mxu0 0.0
    %1609 = vmatpush.msra.mxu0 0.0
    %1610 = vmatpush.msra.mxu0 0.0
    %1611 = vmatpush.msra.mxu0 0.0
    %1612 = vmatpush.msra.mxu0 0.0
    %1613 = vmatpush.msra.mxu0 0.0
    %1614 = vmatpush.msra.mxu0 0.0
    %1615 = vmatpush.msra.mxu0 0.0
    %1616 = vmatpush.msra.mxu0 0.0
    %1617 = vmatpush.msra.mxu0 0.0
    %1618 = vmatpush.msra.mxu0 0.0
    %1619 = vmatpush.msra.mxu0 0.0
    %1620 = vmatpush.msra.mxu0 0.0
    %1621 = vmatpush.msra.mxu0 0.0
    %1622 = vmatpush.msra.mxu0 %v1602
    %1623 = vmatpush.msra.mxu0 %v1600
    %1624 = vmatmul.f32.gmra.mxu0 %v1606
    %v1625 = vpop.f32.mrf.mxu0
    %v1626 = vadd.f32 0.0, %v1625
    %1627 = vdwg.mxu0
    %1628 = vrot.lane.b32.xlu0 %v1021, 96
    %v1629 = vpop.permute.xlu0 %1628
    %1630 = vrot.lane.b32.xlu0 %v1023, 96
    %v1631 = vpop.permute.xlu0 %1630
    %v1635 = vsel %vm1232, %v1424, 0
    %1637 = vmatpush.msra.mxu0 0.0
    %1638 = vmatpush.msra.mxu0 0.0
    %1639 = vmatpush.msra.mxu0 0.0
    %1640 = vmatpush.msra.mxu0 0.0
    %1641 = vmatpush.msra.mxu0 0.0
    %1642 = vmatpush.msra.mxu0 0.0
    %1643 = vmatpush.msra.mxu0 0.0
    %1644 = vmatpush.msra.mxu0 0.0
    %1645 = vmatpush.msra.mxu0 0.0
    %1646 = vmatpush.msra.mxu0 0.0
    %1647 = vmatpush.msra.mxu0 0.0
    %1648 = vmatpush.msra.mxu0 0.0
    %1649 = vmatpush.msra.mxu0 0.0
    %1650 = vmatpush.msra.mxu0 0.0
    %1651 = vmatpush.msra.mxu0 %v1631
    %1652 = vmatpush.msra.mxu0 %v1629
    %1653 = vmatmul.f32.gmra.mxu0 %v1635
    %v1654 = vpop.f32.mrf.mxu0
    %v1655 = vadd.f32 0.0, %v1654
    %1656 = vdwg.mxu0
    %v1658 = vsel %vm111, %v1452, 0
    %v1661 = vsel %vm111, %v1481, 0
    %1663 = vmatpush.msra.mxu0 0.0
    %1664 = vmatpush.msra.mxu0 0.0
    %1665 = vmatpush.msra.mxu0 0.0
    %1666 = vmatpush.msra.mxu0 0.0
    %1667 = vmatpush.msra.mxu0 0.0
    %1668 = vmatpush.msra.mxu0 0.0
    %1669 = vmatpush.msra.mxu0 0.0
    %1670 = vmatpush.msra.mxu0 0.0
    %1671 = vmatpush.msra.mxu0 0.0
    %1672 = vmatpush.msra.mxu0 0.0
    %1673 = vmatpush.msra.mxu0 0.0
    %1674 = vmatpush.msra.mxu0 0.0
    %1675 = vmatpush.msra.mxu0 0.0
    %1676 = vmatpush.msra.mxu0 0.0
    %1677 = vmatpush.msra.mxu0 0.0
    %1678 = vmatpush.msra.mxu0 %v40
    %1679 = vmatmul.f32.gmra.mxu0 %v1658
    %v1680 = vpop.f32.mrf.mxu0
    %v1681 = vadd.f32 0.0, %v1680
    %1682 = vmatmul.f32.gmra.mxu0 %v1661
    %v1683 = vpop.f32.mrf.mxu0
    %v1684 = vadd.f32 0.0, %v1683
    %1685 = vdwg.mxu0
    %v1687 = vsel %vm111, %v1510, 0
    %v1690 = vsel %vm111, %v1539, 0
    %1692 = vmatpush.msra.mxu0 0.0
    %1693 = vmatpush.msra.mxu0 0.0
    %1694 = vmatpush.msra.mxu0 0.0
    %1695 = vmatpush.msra.mxu0 0.0
    %1696 = vmatpush.msra.mxu0 0.0
    %1697 = vmatpush.msra.mxu0 0.0
    %1698 = vmatpush.msra.mxu0 0.0
    %1699 = vmatpush.msra.mxu0 0.0
    %1700 = vmatpush.msra.mxu0 0.0
    %1701 = vmatpush.msra.mxu0 0.0
    %1702 = vmatpush.msra.mxu0 0.0
    %1703 = vmatpush.msra.mxu0 0.0
    %1704 = vmatpush.msra.mxu0 0.0
    %1705 = vmatpush.msra.mxu0 0.0
    %1706 = vmatpush.msra.mxu0 0.0
    %1707 = vmatpush.msra.mxu0 %v41
    %1708 = vmatmul.f32.gmra.mxu0 %v1687
    %v1709 = vpop.f32.mrf.mxu0
    %v1710 = vadd.f32 0.0, %v1709
    %1711 = vmatmul.f32.gmra.mxu0 %v1690
    %v1712 = vpop.f32.mrf.mxu0
    %v1713 = vadd.f32 0.0, %v1712
    %1714 = vdwg.mxu0
    %v1716 = vsel %vm111, %v1568, 0
    %v1719 = vsel %vm111, %v1597, 0
    %1721 = vmatpush.msra.mxu0 0.0
    %1722 = vmatpush.msra.mxu0 0.0
    %1723 = vmatpush.msra.mxu0 0.0
    %1724 = vmatpush.msra.mxu0 0.0
    %1725 = vmatpush.msra.mxu0 0.0
    %1726 = vmatpush.msra.mxu0 0.0
    %1727 = vmatpush.msra.mxu0 0.0
    %1728 = vmatpush.msra.mxu0 0.0
    %1729 = vmatpush.msra.mxu0 0.0
    %1730 = vmatpush.msra.mxu0 0.0
    %1731 = vmatpush.msra.mxu0 0.0
    %1732 = vmatpush.msra.mxu0 0.0
    %1733 = vmatpush.msra.mxu0 0.0
    %1734 = vmatpush.msra.mxu0 0.0
    %1735 = vmatpush.msra.mxu0 0.0
    %1736 = vmatpush.msra.mxu0 %v42
    %1737 = vmatmul.f32.gmra.mxu0 %v1716
    %v1738 = vpop.f32.mrf.mxu0
    %v1739 = vadd.f32 0.0, %v1738
    %1740 = vmatmul.f32.gmra.mxu0 %v1719
    %v1741 = vpop.f32.mrf.mxu0
    %v1742 = vadd.f32 0.0, %v1741
    %1743 = vdwg.mxu0
    %v1745 = vsel %vm111, %v1626, 0
    %v1748 = vsel %vm111, %v1655, 0
    %1750 = vmatpush.msra.mxu0 0.0
    %1751 = vmatpush.msra.mxu0 0.0
    %1752 = vmatpush.msra.mxu0 0.0
    %1753 = vmatpush.msra.mxu0 0.0
    %1754 = vmatpush.msra.mxu0 0.0
    %1755 = vmatpush.msra.mxu0 0.0
    %1756 = vmatpush.msra.mxu0 0.0
    %1757 = vmatpush.msra.mxu0 0.0
    %1758 = vmatpush.msra.mxu0 0.0
    %1759 = vmatpush.msra.mxu0 0.0
    %1760 = vmatpush.msra.mxu0 0.0
    %1761 = vmatpush.msra.mxu0 0.0
    %1762 = vmatpush.msra.mxu0 0.0
    %1763 = vmatpush.msra.mxu0 0.0
    %1764 = vmatpush.msra.mxu0 0.0
    %1765 = vmatpush.msra.mxu0 %v43
    %1766 = vmatmul.f32.gmra.mxu0 %v1745
    %v1767 = vpop.f32.mrf.mxu0
    %v1768 = vadd.f32 0.0, %v1767
    %1769 = vmatmul.f32.gmra.mxu0 %v1748
    %v1770 = vpop.f32.mrf.mxu0
    %v1771 = vadd.f32 0.0, %v1770
    %1772 = vdwg.mxu0
    %v1773 = vsel %vm65, %v1681, 0.0
    %v1774 = vsel %vm65, %v1710, 0.0
    %v1775 = vadd.f32 %v1773, %v1774
    %v1776 = vsel %vm65, %v1739, 0.0
    %v1777 = vadd.f32 %v1775, %v1776
    %v1778 = vsel %vm65, %v1768, 0.0
    %v1779 = vadd.f32 %v1777, %v1778
    %v1780 = vsel %vm65, %v1684, 0.0
    %v1781 = vsel %vm65, %v1713, 0.0
    %v1782 = vadd.f32 %v1780, %v1781
    %v1783 = vsel %vm65, %v1742, 0.0
    %v1784 = vadd.f32 %v1782, %v1783
    %v1785 = vsel %vm65, %v1771, 0.0
    %v1786 = vadd.f32 %v1784, %v1785
    %v1787 = vperm.slane %v61, 0
    %v1788 = vadd.f32 %v1779, %v1787
    %v1789 = vadd.f32 %v1786, %v1787
    %v1790 = vsel %vm1232, %v1319, 0.0
    %v1791 = vsel %vm1232, %v1349, 0.0
    %v1792 = vadd.f32 %v1790, %v1791
    %v1793 = vsel %vm1232, %v1379, 0.0
    %v1794 = vadd.f32 %v1792, %v1793
    %v1795 = vsel %vm1232, %v1409, 0.0
    %v1796 = vadd.f32 %v1794, %v1795
    %v1797 = vsel %vm1232, %v1334, 0.0
    %v1798 = vsel %vm1232, %v1364, 0.0
    %v1799 = vadd.f32 %v1797, %v1798
    %v1800 = vsel %vm1232, %v1394, 0.0
    %v1801 = vadd.f32 %v1799, %v1800
    %v1802 = vsel %vm1232, %v1424, 0.0
    %v1803 = vadd.f32 %v1801, %v1802
    %v1804 = vmul.f32 %v1796, 0.25
    %v1805 = vmul.f32 %v1803, 0.25
    %v1806 = vadd.f32 %v908, %v1788
    %v1807 = vadd.f32 %v909, %v1789
    %v1808 = vsel %vm65, %v1806, 0.0
    %1809 = vadd.xlane.f32.xlu0 %v1808
    %v1810 = vpop.xlane.xlu0 %1809
    %v1811 = vsel %vm65, %v1807, 0.0
    %1812 = vadd.xlane.f32.xlu0 %v1811
    %v1813 = vpop.xlane.xlu0 %1812
    %v1814 = vmul.f32 %v1810, %v865
    %v1815 = vmul.f32 %v1813, %v865
    %v1816 = vsub.f32 %v1806, %v1814
    %v1817 = vsub.f32 %v1807, %v1815
    %v1818 = vmul.f32 %v1816, %v1816
    %v1819 = vmul.f32 %v1817, %v1817
    %v1820 = vsel %vm65, %v1818, 0.0
    %1821 = vadd.xlane.f32.xlu0 %v1820
    %v1822 = vpop.xlane.xlu0 %1821
    %v1823 = vsel %vm65, %v1819, 0.0
    %1824 = vadd.xlane.f32.xlu0 %v1823
    %v1825 = vpop.xlane.xlu0 %1824
    %v1826 = vmul.f32 %v1822, %v865
    %v1827 = vmul.f32 %v1825, %v865
    %v1828 = vadd.f32 %v1826, 1e-05
    %v1829 = vadd.f32 %v1827, 1e-05
    %v1830 = vrsqrt.pop %v1828
    %v1831 = vmul.f32 %v1830, %v1828
    %v1832 = vmul.f32 %v1831, %v1830
    %v1833 = vmul.f32 0.5, %v1832
    %v1834 = vsub.f32 1.5, %v1833
    %v1835 = vmul.f32 %v1830, %v1834
    %vm1836 = vweird.f32 %v1828
    %vm1837 = vweird.f32 %v1830
    %vm1838 = vmor %vm1836, %vm1837
    %v1839 = vsel %vm1838, %v1830, %v1835
    %v1840 = vrsqrt.pop %v1829
    %v1841 = vmul.f32 %v1840, %v1829
    %v1842 = vmul.f32 %v1841, %v1840
    %v1843 = vmul.f32 0.5, %v1842
    %v1844 = vsub.f32 1.5, %v1843
    %v1845 = vmul.f32 %v1840, %v1844
    %vm1846 = vweird.f32 %v1829
    %vm1847 = vweird.f32 %v1840
    %vm1848 = vmor %vm1846, %vm1847
    %v1849 = vsel %vm1848, %v1840, %v1845
    %v1850 = vmul.f32 %v1816, %v1839
    %v1851 = vmul.f32 %v1817, %v1849
    %v1852 = vperm.slane %v56, 2
    %v1853 = vmul.f32 %v1850, %v1852
    %v1854 = vmul.f32 %v1851, %v1852
    %v1855 = vperm.slane %v56, 3
    %v1856 = vadd.f32 %v1853, %v1855
    %v1857 = vadd.f32 %v1854, %v1855
    %v1858 = vperm.slane %v62, 0
    %v1860 = vsel %vm65, %v1856, 0
    %v1863 = vsel %vm65, %v1857, 0
    %1865 = vmatpush.msra.mxu0 0.0
    %1866 = vmatpush.msra.mxu0 0.0
    %1867 = vmatpush.msra.mxu0 0.0
    %1868 = vmatpush.msra.mxu0 0.0
    %1869 = vmatpush.msra.mxu0 0.0
    %1870 = vmatpush.msra.mxu0 0.0
    %1871 = vmatpush.msra.mxu0 0.0
    %1872 = vmatpush.msra.mxu0 0.0
    %1873 = vmatpush.msra.mxu0 0.0
    %1874 = vmatpush.msra.mxu0 0.0
    %1875 = vmatpush.msra.mxu0 0.0
    %1876 = vmatpush.msra.mxu0 0.0
    %1877 = vmatpush.msra.mxu0 %v47
    %1878 = vmatpush.msra.mxu0 %v46
    %1879 = vmatpush.msra.mxu0 %v45
    %1880 = vmatpush.msra.mxu0 %v44
    %1881 = vmatmul.f32.gmra.mxu0 %v1860
    %v1882 = vpop.f32.mrf.mxu0
    %v1883 = vadd.f32 %v1858, %v1882
    %1884 = vmatmul.f32.gmra.mxu0 %v1863
    %v1885 = vpop.f32.mrf.mxu0
    %v1886 = vadd.f32 %v1858, %v1885
    %1887 = vdwg.mxu0
    %v1888 = vmax.f32 %v1883, 0.0
    %v1889 = vmax.f32 %v1886, 0.0
    %v1890 = vperm.slane %v63, 0
    %vm1891 = vcmask 523264
    %v1893 = vsel %vm1891, %v1888, 0
    %v1896 = vsel %vm1891, %v1889, 0
    %1898 = vmatpush.msra.mxu0 0.0
    %1899 = vmatpush.msra.mxu0 0.0
    %1900 = vmatpush.msra.mxu0 0.0
    %1901 = vmatpush.msra.mxu0 0.0
    %1902 = vmatpush.msra.mxu0 0.0
    %1903 = vmatpush.msra.mxu0 0.0
    %1904 = vmatpush.msra.mxu0 0.0
    %1905 = vmatpush.msra.mxu0 0.0
    %1906 = vmatpush.msra.mxu0 %v55
    %1907 = vmatpush.msra.mxu0 %v54
    %1908 = vmatpush.msra.mxu0 %v53
    %1909 = vmatpush.msra.mxu0 %v52
    %1910 = vmatpush.msra.mxu0 %v51
    %1911 = vmatpush.msra.mxu0 %v50
    %1912 = vmatpush.msra.mxu0 %v49
    %1913 = vmatpush.msra.mxu0 %v48
    %1914 = vmatmul.f32.gmra.mxu0 %v1893
    %v1915 = vpop.f32.mrf.mxu0
    %v1916 = vadd.f32 %v1890, %v1915
    %1917 = vmatmul.f32.gmra.mxu0 %v1896
    %v1918 = vpop.f32.mrf.mxu0
    %v1919 = vadd.f32 %v1890, %v1918
    %1920 = vdwg.mxu0
    %v1921 = vadd.f32 %v1856, %v1916
    %v1922 = vadd.f32 %v1857, %v1919
    %v1923 = vsel %vm65, %v1921, 0.0
    %1924 = vadd.xlane.f32.xlu0 %v1923
    %v1925 = vpop.xlane.xlu0 %1924
    %v1926 = vsel %vm65, %v1922, 0.0
    %1927 = vadd.xlane.f32.xlu0 %v1926
    %v1928 = vpop.xlane.xlu0 %1927
    %v1929 = vmul.f32 %v1925, %v865
    %v1930 = vmul.f32 %v1928, %v865
    %v1931 = vsub.f32 %v1921, %v1929
    %v1932 = vsub.f32 %v1922, %v1930
    %v1933 = vmul.f32 %v1931, %v1931
    %v1934 = vmul.f32 %v1932, %v1932
    %v1935 = vsel %vm65, %v1933, 0.0
    %1936 = vadd.xlane.f32.xlu0 %v1935
    %v1937 = vpop.xlane.xlu0 %1936
    %v1938 = vsel %vm65, %v1934, 0.0
    %1939 = vadd.xlane.f32.xlu0 %v1938
    %v1940 = vpop.xlane.xlu0 %1939
    %v1941 = vmul.f32 %v1937, %v865
    %v1942 = vmul.f32 %v1940, %v865
    %v1943 = vadd.f32 %v1941, 1e-05
    %v1944 = vadd.f32 %v1942, 1e-05
    %v1945 = vrsqrt.pop %v1943
    %v1946 = vmul.f32 %v1945, %v1943
    %v1947 = vmul.f32 %v1946, %v1945
    %v1948 = vmul.f32 0.5, %v1947
    %v1949 = vsub.f32 1.5, %v1948
    %v1950 = vmul.f32 %v1945, %v1949
    %vm1951 = vweird.f32 %v1943
    %vm1952 = vweird.f32 %v1945
    %vm1953 = vmor %vm1951, %vm1952
    %v1954 = vsel %vm1953, %v1945, %v1950
    %v1955 = vrsqrt.pop %v1944
    %v1956 = vmul.f32 %v1955, %v1944
    %v1957 = vmul.f32 %v1956, %v1955
    %v1958 = vmul.f32 0.5, %v1957
    %v1959 = vsub.f32 1.5, %v1958
    %v1960 = vmul.f32 %v1955, %v1959
    %vm1961 = vweird.f32 %v1944
    %vm1962 = vweird.f32 %v1955
    %vm1963 = vmor %vm1961, %vm1962
    %v1964 = vsel %vm1963, %v1955, %v1960
    %v1965 = vmul.f32 %v1931, %v1954
    %v1966 = vmul.f32 %v1932, %v1964
    %v1967 = vperm.slane %v56, 4
    %v1968 = vmul.f32 %v1965, %v1967
    %v1969 = vmul.f32 %v1966, %v1967
    %v1970 = vperm.slane %v56, 5
    %v1971 = vadd.f32 %v1968, %v1970
    %v1972 = vadd.f32 %v1969, %v1970
    %1973 = vst.msk [vmem:[#allocation2] sm:$0xff] %vm65, %v1971
    %1974 = vst.msk [vmem:[#allocation2 + $0x8] sm:$0xff] %vm65, %v1972
    %1975 = vst.msk [vmem:[#allocation4] sm:$0xff] %vm1232, %v1804
    %1976 = vst.msk [vmem:[#allocation4 + $0x8] sm:$0xff] %vm1232, %v1805
    // Predicated region
    $region14: #{transformer_decoder_layer.1} parent=1 // pred_check
      _
    $region15: #{transformer_decoder_layer.1} parent=1 // pred_check_branch
      %1978 = sbr.rel (0) target = $region17
    $region16: #{transformer_decoder_layer.1} parent=1 // pred_region
      %1980 = vsyncadd [#allocation3], 0
      %s1981 = sshll.u32 [#allocation2], 4
      %s1982 = int_to_ptr.vmem [resolvable:$true] %s1981
      %s1983 = sshll.u32 %s3, 4
      %s1984 = int_to_ptr.hbm [resolvable:$true] %s1983
      %1989 = dma.vmem_to_hbm [thread:$0]  %s1982, 256, %s1984, [#allocation3], 128, 128, 8
    $region17: #{transformer_decoder_layer.1} parent=1 // pred_fallthru
      _
    // Predicated region
    $region18: #{transformer_decoder_layer.1} parent=1 // pred_check
      _
    $region19: #{transformer_decoder_layer.1} parent=1 // pred_check_branch
      %1991 = sbr.rel (0) target = $region21
    $region20: #{transformer_decoder_layer.1} parent=1 // pred_region
      %1993 = vsyncadd [#allocation5], 0
      %s1994 = sshll.u32 [#allocation4], 4
      %s1995 = int_to_ptr.vmem [resolvable:$true] %s1994
      %s1996 = sshll.u32 %s4, 4
      %s1997 = int_to_ptr.hbm [resolvable:$true] %s1996
      %2002 = dma.vmem_to_hbm [thread:$0]  %s1995, 256, %s1997, [#allocation5], 128, 128, 8
    $region21: #{transformer_decoder_layer.1} parent=1 // pred_fallthru
      _
    // Predicated region
    $region22: #{transformer_decoder_layer.1} parent=1 // pred_check
      _
    $region23: #{transformer_decoder_layer.1} parent=1 // pred_check_branch
      %2004 = sbr.rel (0) target = $region25
    $region24: #{transformer_decoder_layer.1} parent=1 // pred_region
      %2006 = dma.done [#allocation3], 256
    $region25: #{transformer_decoder_layer.1} parent=1 // pred_fallthru
      _
    // Predicated region
    $region26: #{transformer_decoder_layer.1} parent=1 // pred_check
      _
    $region27: #{transformer_decoder_layer.1} parent=1 // pred_check_branch
      %2008 = sbr.rel (0) target = $region29
    $region28: #{transformer_decoder_layer.1} parent=1 // pred_region
      %2010 = dma.done [#allocation5], 256
    $region29: #{transformer_decoder_layer.1} parent=1 // pred_fallthru
      _
    %2011 = vsyncpa [#allocation3], 1
    %2012 = vsyncpa [#allocation5], 1

</llo_original>
